<compile_context>
chip_gen: v7x
topology: tpu7x:2x2x1
jax: 0.10.0
libtpu: 0.0.40
codegen_flags: <defaults>
</compile_context>

<pallas_src>
import functools

import jax
import jax.numpy as jnp
from jax.experimental import pallas as pl
from jax.experimental.pallas import tpu as pltpu

LEAKY_SLOPE = 0.01   # nn.LeakyReLU default
BN_EPS = 1e-5        # nn.BatchNorm default
TILE_M = 128         # rows of the im2col matrix handled per grid step
LANE = 128           # TPU lane width; final output padded to this for dense stores

CONV_CFG = (("conv1", 8, 4), ("conv2", 4, 2), ("conv3", 3, 1))


def _round_up(x, m):
    return ((x + m - 1) // m) * m


def _conv_out(s, k, stride):
    return (s - k) // stride + 1


# ------------------------------ Pallas kernels ----------------------------- #

def _matmul_bias_act_kernel(x_ref, w_ref, b_ref, o_ref, *, apply_act):
    # bf16 operands on the MXU, f32 accumulation; bias + LeakyReLU epilogue in f32.
    z = jnp.dot(x_ref[...], w_ref[...], preferred_element_type=jnp.float32)
    z = z + b_ref[...]
    if apply_act:
        z = jnp.where(z > 0, z, LEAKY_SLOPE * z)
    o_ref[...] = z.astype(o_ref.dtype)


def _mlp_head_kernel(x_ref, w1_ref, b1_ref, w2_ref, b2_ref, o_ref):
    # fc1 (+folded BN bias + LeakyReLU) and fc2 (+bias) fused: the 512-wide
    # hidden stays in VMEM; the padded 128-wide output is stored lane-dense.
    h = jnp.dot(x_ref[...], w1_ref[...], preferred_element_type=jnp.float32)
    h = h + b1_ref[...]
    h = jnp.where(h > 0, h, LEAKY_SLOPE * h)
    z = jnp.dot(h.astype(w2_ref.dtype), w2_ref[...],
                preferred_element_type=jnp.float32)
    o_ref[...] = (z + b2_ref[...]).astype(o_ref.dtype)


def matmul_bias_act(x, w, bias, *, apply_act, out_dtype):
    """out = [leaky_relu]((x @ w) + bias), tiled over rows of x (M axis)."""
    M, K = x.shape
    Kw, N = w.shape
    assert K == Kw, (K, Kw)
    bm = M if M <= TILE_M else TILE_M            # full dim, or 8-aligned tile
    grid = (pl.cdiv(M, bm),)
    kernel = functools.partial(_matmul_bias_act_kernel, apply_act=apply_act)
    return pl.pallas_call(
        kernel,
        out_shape=jax.ShapeDtypeStruct((M, N), out_dtype),
        grid=grid,
        in_specs=[
            pl.BlockSpec((bm, K), lambda i: (i, 0)),
            pl.BlockSpec((K, N), lambda i: (0, 0)),
            pl.BlockSpec((1, N), lambda i: (0, 0)),
        ],
        out_specs=pl.BlockSpec((bm, N), lambda i: (i, 0)),
        compiler_params=pltpu.CompilerParams(
            dimension_semantics=("parallel",)),
    )(x, w, bias)


def mlp_head(x, w1, b1, w2, b2):
    """Fused fc1 (+BN+LeakyReLU, folded) and fc2, tiled over batch rows."""
    M, K = x.shape
    H = w1.shape[1]
    Np = w2.shape[1]
    bm = M if M <= TILE_M else TILE_M
    grid = (pl.cdiv(M, bm),)
    return pl.pallas_call(
        _mlp_head_kernel,
        out_shape=jax.ShapeDtypeStruct((M, Np), jnp.float32),
        grid=grid,
        in_specs=[
            pl.BlockSpec((bm, K), lambda i: (i, 0)),
            pl.BlockSpec((K, H), lambda i: (0, 0)),
            pl.BlockSpec((1, H), lambda i: (0, 0)),
            pl.BlockSpec((H, Np), lambda i: (0, 0)),
            pl.BlockSpec((1, Np), lambda i: (0, 0)),
        ],
        out_specs=pl.BlockSpec((bm, Np), lambda i: (i, 0)),
        compiler_params=pltpu.CompilerParams(
            dimension_semantics=("parallel",)),
    )(x, w1, b1, w2, b2)


# ------------------------------- glue (JAX) -------------------------------- #

def im2col_nhwc(x, k, stride):
    """x: (N, H, W, C) -> cols: (N*Ho*Wo, k*k*C), column order (kh, kw, Cin)."""
    N, H, W, C = x.shape
    Ho = (H - k) // stride + 1
    Wo = (W - k) // stride + 1
    cols = []
    for i in range(k):
        for j in range(k):
            cols.append(x[:, i:i + stride * Ho:stride, j:j + stride * Wo:stride, :])
    cols = jnp.concatenate(cols, axis=-1)          # (N, Ho, Wo, k*k*C)
    return cols.reshape(N * Ho * Wo, k * k * C), (N, Ho, Wo)


# ----------------------- one-time parameter preparation -------------------- #

def prepare_inference_params(params, h, w):
    """Fold eval-mode BN into weights, pre-transpose/permute, cast to bf16 once."""
    prep = {}
    for name, k, _ in CONV_CFG:
        cw, cb, gamma, beta, mean, var = params[name]
        cout, cin = cw.shape[0], cw.shape[1]
        s = gamma / jnp.sqrt(var + BN_EPS)
        # PyTorch conv weight (Cout, Cin, kh, kw) -> (kh, kw, Cin, Cout) -> 2D,
        # matching the im2col column ordering; BN scale folded into the weight.
        w2 = jnp.transpose(cw, (2, 3, 1, 0)).reshape(k * k * cin, cout)
        w2 = (w2 * s[None, :]).astype(jnp.bfloat16)
        bias = ((cb - mean) * s + beta).astype(jnp.float32).reshape(1, cout)
        prep[name] = (w2, bias)

    convh, convw = h, w
    for _, k, st in CONV_CFG:
        convh = _conv_out(convh, k, st)
        convw = _conv_out(convw, k, st)
    c3 = params["conv3"][0].shape[0]

    # fc1: fold BN, transpose to (in, out), and permute rows from PyTorch's
    # NCHW flatten order to our NHWC flatten order (done once, not per forward).
    fw, fb, gamma, beta, mean, var = params["fc1"]
    s = gamma / jnp.sqrt(var + BN_EPS)
    w1 = fw.T * s[None, :]                                   # (flat_dim, 512)
    w1 = (w1.reshape(c3, convh, convw, -1)
            .transpose(1, 2, 0, 3)
            .reshape(convh * convw * c3, -1)).astype(jnp.bfloat16)
    b1 = ((fb - mean) * s + beta).astype(jnp.float32).reshape(1, -1)
    prep["fc1"] = (w1, b1)

    # fc2: pre-transpose and zero-pad the output dim to a lane-dense 128.
    n_out = params["fc2_w"].shape[0]
    n_pad = _round_up(n_out, LANE)
    w2 = jnp.pad(params["fc2_w"].T, ((0, 0), (0, n_pad - n_out))).astype(jnp.bfloat16)
    b2 = jnp.pad(params["fc2_b"], (0, n_pad - n_out)).astype(jnp.float32).reshape(1, n_pad)
    prep["fc2"] = (w2, b2)
    return prep, n_out


# ----------------------------- parameter init ------------------------------ #

def _bn_params(key, c):
    k1, k2, k3, k4 = jax.random.split(key, 4)
    gamma = 1.0 + 0.1 * jax.random.normal(k1, (c,), jnp.float32)
    beta = 0.1 * jax.random.normal(k2, (c,), jnp.float32)
    mean = 0.1 * jax.random.normal(k3, (c,), jnp.float32)
    var = jax.random.uniform(k4, (c,), jnp.float32, 0.5, 1.5)
    return gamma, beta, mean, var


def _conv_block_params(key, cin, cout, k):
    k1, k2, k3 = jax.random.split(key, 3)
    w = 0.05 * jax.random.normal(k1, (cout, cin, k, k), jnp.float32)
    b = 0.05 * jax.random.normal(k2, (cout,), jnp.float32)
    return (w, b) + _bn_params(k3, cout)


def _lin_block_params(key, din, dout):
    k1, k2, k3 = jax.random.split(key, 3)
    w = 0.05 * jax.random.normal(k1, (dout, din), jnp.float32)
    b = 0.05 * jax.random.normal(k2, (dout,), jnp.float32)
    return (w, b) + _bn_params(k3, dout)


def init_dqn_params(key, h, w, outputs):
    convw = _conv_out(_conv_out(_conv_out(w, 8, 4), 4, 2), 3, 1)
    convh = _conv_out(_conv_out(_conv_out(h, 8, 4), 4, 2), 3, 1)
    flat_dim = convw * convh * 64

    keys = jax.random.split(key, 5)
    params = {
        "conv1": _conv_block_params(keys[0], 1, 32, 8),
        "conv2": _conv_block_params(keys[1], 32, 64, 4),
        "conv3": _conv_block_params(keys[2], 64, 64, 3),
        "fc1": _lin_block_params(keys[3], flat_dim, 512),
    }
    k1, k2 = jax.random.split(keys[4])
    params["fc2_w"] = 0.05 * jax.random.normal(k1, (outputs, 512), jnp.float32)
    params["fc2_b"] = 0.05 * jax.random.normal(k2, (outputs,), jnp.float32)
    return params


# -------------------------------- forward ---------------------------------- #

@functools.partial(jax.jit, static_argnames=("n_out",))
def dqn_forward(prep, x_nchw, *, n_out):
    x = jnp.transpose(x_nchw, (0, 2, 3, 1)).astype(jnp.bfloat16)   # NCHW -> NHWC
    for name, k, stride in CONV_CFG:
        w2, bias = prep[name]
        cols, (n, ho, wo) = im2col_nhwc(x, k, stride)
        out = matmul_bias_act(cols, w2, bias, apply_act=True,
                              out_dtype=jnp.bfloat16)
        x = out.reshape(n, ho, wo, w2.shape[1])
    n = x.shape[0]
    flat = x.reshape(n, -1)   # NHWC flatten; fc1 weight rows pre-permuted to match.
    w1, b1 = prep["fc1"]
    w2, b2 = prep["fc2"]
    out = mlp_head(flat, w1, b1, w2, b2)        # (n, 128) lane-dense f32
    return out[:, :n_out]


if __name__ == "__main__":
    H, W, OUTPUTS, BATCH = 40, 40, 4, 2
    key = jax.random.PRNGKey(0)
    k_param, k_x = jax.random.split(key)
    params = init_dqn_params(k_param, H, W, OUTPUTS)
    prep, n_out = prepare_inference_params(params, H, W)
    x = jax.random.normal(k_x, (BATCH, 1, H, W), jnp.float32)   # NCHW like PyTorch

    out = dqn_forward(prep, x, n_out=n_out)
    out = jax.block_until_ready(out)
    assert out.shape == (BATCH, OUTPUTS), out.shape
    print("KERNEL_OK")
</pallas_src>

<mosaic_0001>
module attributes {stable_mosaic.version = 11 : i64} {
  func.func @_matmul_bias_act_kernel(%arg0: i32, %arg1: memref<128x64xbf16, #tpu.memory_space<vmem>>, %arg2: memref<64x32xbf16, #tpu.memory_space<vmem>>, %arg3: memref<1x32xf32, #tpu.memory_space<vmem>>, %arg4: memref<128x32xbf16, #tpu.memory_space<vmem>>) attributes {dimension_semantics = [#tpu.dimension_semantics<parallel>], iteration_bounds = array<i64: 2>, scalar_prefetch = 0 : i64, scratch_operands = 0 : i64, tpu.core_type = #tpu.core_type<tc>, window_params = [{transform_indices = @transform_0, window_bounds = array<i64: 128, 64>}, {pipeline_mode = #tpu.pipeline_mode<synchronous>, transform_indices = @transform_1, window_bounds = array<i64: 64, 32>}, {pipeline_mode = #tpu.pipeline_mode<synchronous>, transform_indices = @transform_2, window_bounds = array<i64: 1, 32>}, {transform_indices = @transform_3, window_bounds = array<i64: 128, 32>}]} {
    %c0 = arith.constant 0 : index
    %c0_0 = arith.constant 0 : index
    %0 = vector.load %arg1[%c0, %c0_0] : memref<128x64xbf16, #tpu.memory_space<vmem>>, vector<128x64xbf16>
    %c0_1 = arith.constant 0 : index
    %c0_2 = arith.constant 0 : index
    %1 = vector.load %arg2[%c0_1, %c0_2] : memref<64x32xbf16, #tpu.memory_space<vmem>>, vector<64x32xbf16>
    %cst = arith.constant dense<0.000000e+00> : vector<128x32xf32>
    %2 = tpu.matmul %0, %1, %cst {dimension_numbers = #tpu.dot_dimension_numbers<[1], [0], [0], [1], [0, 0, 1, 1], [], []>} : vector<128x64xbf16>, vector<64x32xbf16>, vector<128x32xf32> -> vector<128x32xf32>
    %c0_3 = arith.constant 0 : index
    %c0_4 = arith.constant 0 : index
    %3 = vector.load %arg3[%c0_3, %c0_4] : memref<1x32xf32, #tpu.memory_space<vmem>>, vector<1x32xf32>
    %4 = vector.broadcast %3 : vector<1x32xf32> to vector<128x32xf32>
    %5 = arith.addf %2, %4 : vector<128x32xf32>
    %cst_5 = arith.constant 0.000000e+00 : f32
    %6 = vector.broadcast %cst_5 : f32 to vector<128x32xf32>
    %7 = arith.cmpf ogt, %5, %6 : vector<128x32xf32>
    %cst_6 = arith.constant 0.00999999977 : f32
    %8 = vector.broadcast %cst_6 : f32 to vector<128x32xf32>
    %9 = arith.mulf %8, %5 : vector<128x32xf32>
    %10 = arith.select %7, %5, %9 : vector<128x32xi1>, vector<128x32xf32>
    %11 = arith.truncf %10 : vector<128x32xf32> to vector<128x32xbf16>
    %c0_7 = arith.constant 0 : index
    %c0_8 = arith.constant 0 : index
    %12 = vector.load %arg4[%c0_7, %c0_8] : memref<128x32xbf16, #tpu.memory_space<vmem>>, vector<128x32xbf16>
    tpu.vector_store %arg4[%c0_7, %c0_8], %11 {strides = array<i32>} : memref<128x32xbf16, #tpu.memory_space<vmem>>, vector<128x32xbf16>,
    return
  }
  func.func @transform_0(%arg0: i32) -> (i32, i32) {
    %c0_i32 = arith.constant 0 : i32
    %c0_i32_0 = arith.constant 0 : i32
    return %arg0, %c0_i32 : i32, i32
  }
  func.func @transform_1(%arg0: i32) -> (i32, i32) {
    %c0_i32 = arith.constant 0 : i32
    %c0_i32_0 = arith.constant 0 : i32
    %c0_i32_1 = arith.constant 0 : i32
    return %c0_i32, %c0_i32_0 : i32, i32
  }
  func.func @transform_2(%arg0: i32) -> (i32, i32) {
    %c0_i32 = arith.constant 0 : i32
    %c0_i32_0 = arith.constant 0 : i32
    %c0_i32_1 = arith.constant 0 : i32
    return %c0_i32, %c0_i32_0 : i32, i32
  }
  func.func @transform_3(%arg0: i32) -> (i32, i32) {
    %c0_i32 = arith.constant 0 : i32
    %c0_i32_0 = arith.constant 0 : i32
    return %arg0, %c0_i32 : i32, i32
  }
}

module attributes {stable_mosaic.version = 11 : i64} {
  func.func @_matmul_bias_act_kernel(%arg0: i32, %arg1: memref<18x512xbf16, #tpu.memory_space<vmem>>, %arg2: memref<512x64xbf16, #tpu.memory_space<vmem>>, %arg3: memref<1x64xf32, #tpu.memory_space<vmem>>, %arg4: memref<18x64xbf16, #tpu.memory_space<vmem>>) attributes {dimension_semantics = [#tpu.dimension_semantics<parallel>], iteration_bounds = array<i64: 1>, scalar_prefetch = 0 : i64, scratch_operands = 0 : i64, tpu.core_type = #tpu.core_type<tc>, window_params = [{transform_indices = @transform_0, window_bounds = array<i64: 18, 512>}, {pipeline_mode = #tpu.pipeline_mode<synchronous>, transform_indices = @transform_1, window_bounds = array<i64: 512, 64>}, {pipeline_mode = #tpu.pipeline_mode<synchronous>, transform_indices = @transform_2, window_bounds = array<i64: 1, 64>}, {transform_indices = @transform_3, window_bounds = array<i64: 18, 64>}]} {
    %c0 = arith.constant 0 : index
    %c0_0 = arith.constant 0 : index
    %0 = vector.load %arg1[%c0, %c0_0] : memref<18x512xbf16, #tpu.memory_space<vmem>>, vector<18x512xbf16>
    %c0_1 = arith.constant 0 : index
    %c0_2 = arith.constant 0 : index
    %1 = vector.load %arg2[%c0_1, %c0_2] : memref<512x64xbf16, #tpu.memory_space<vmem>>, vector<512x64xbf16>
    %cst = arith.constant dense<0.000000e+00> : vector<18x64xf32>
    %2 = tpu.matmul %0, %1, %cst {dimension_numbers = #tpu.dot_dimension_numbers<[1], [0], [0], [1], [0, 0, 1, 1], [], []>} : vector<18x512xbf16>, vector<512x64xbf16>, vector<18x64xf32> -> vector<18x64xf32>
    %c0_3 = arith.constant 0 : index
    %c0_4 = arith.constant 0 : index
    %3 = vector.load %arg3[%c0_3, %c0_4] : memref<1x64xf32, #tpu.memory_space<vmem>>, vector<1x64xf32>
    %4 = vector.broadcast %3 : vector<1x64xf32> to vector<18x64xf32>
    %5 = arith.addf %2, %4 : vector<18x64xf32>
    %cst_5 = arith.constant 0.000000e+00 : f32
    %6 = vector.broadcast %cst_5 : f32 to vector<18x64xf32>
    %7 = arith.cmpf ogt, %5, %6 : vector<18x64xf32>
    %cst_6 = arith.constant 0.00999999977 : f32
    %8 = vector.broadcast %cst_6 : f32 to vector<18x64xf32>
    %9 = arith.mulf %8, %5 : vector<18x64xf32>
    %10 = arith.select %7, %5, %9 : vector<18x64xi1>, vector<18x64xf32>
    %11 = arith.truncf %10 : vector<18x64xf32> to vector<18x64xbf16>
    %c0_7 = arith.constant 0 : index
    %c0_8 = arith.constant 0 : index
    %12 = vector.load %arg4[%c0_7, %c0_8] : memref<18x64xbf16, #tpu.memory_space<vmem>>, vector<18x64xbf16>
    tpu.vector_store %arg4[%c0_7, %c0_8], %11 {strides = array<i32>} : memref<18x64xbf16, #tpu.memory_space<vmem>>, vector<18x64xbf16>,
    return
  }
  func.func @transform_0(%arg0: i32) -> (i32, i32) {
    %c0_i32 = arith.constant 0 : i32
    %c0_i32_0 = arith.constant 0 : i32
    return %arg0, %c0_i32 : i32, i32
  }
  func.func @transform_1(%arg0: i32) -> (i32, i32) {
    %c0_i32 = arith.constant 0 : i32
    %c0_i32_0 = arith.constant 0 : i32
    %c0_i32_1 = arith.constant 0 : i32
    return %c0_i32, %c0_i32_0 : i32, i32
  }
  func.func @transform_2(%arg0: i32) -> (i32, i32) {
    %c0_i32 = arith.constant 0 : i32
    %c0_i32_0 = arith.constant 0 : i32
    %c0_i32_1 = arith.constant 0 : i32
    return %c0_i32, %c0_i32_0 : i32, i32
  }
  func.func @transform_3(%arg0: i32) -> (i32, i32) {
    %c0_i32 = arith.constant 0 : i32
    %c0_i32_0 = arith.constant 0 : i32
    return %arg0, %c0_i32 : i32, i32
  }
}

module attributes {stable_mosaic.version = 11 : i64} {
  func.func @_matmul_bias_act_kernel(%arg0: i32, %arg1: memref<2x576xbf16, #tpu.memory_space<vmem>>, %arg2: memref<576x64xbf16, #tpu.memory_space<vmem>>, %arg3: memref<1x64xf32, #tpu.memory_space<vmem>>, %arg4: memref<2x64xbf16, #tpu.memory_space<vmem>>) attributes {dimension_semantics = [#tpu.dimension_semantics<parallel>], iteration_bounds = array<i64: 1>, scalar_prefetch = 0 : i64, scratch_operands = 0 : i64, tpu.core_type = #tpu.core_type<tc>, window_params = [{transform_indices = @transform_0, window_bounds = array<i64: 2, 576>}, {pipeline_mode = #tpu.pipeline_mode<synchronous>, transform_indices = @transform_1, window_bounds = array<i64: 576, 64>}, {pipeline_mode = #tpu.pipeline_mode<synchronous>, transform_indices = @transform_2, window_bounds = array<i64: 1, 64>}, {transform_indices = @transform_3, window_bounds = array<i64: 2, 64>}]} {
    %c0 = arith.constant 0 : index
    %c0_0 = arith.constant 0 : index
    %0 = vector.load %arg1[%c0, %c0_0] : memref<2x576xbf16, #tpu.memory_space<vmem>>, vector<2x576xbf16>
    %c0_1 = arith.constant 0 : index
    %c0_2 = arith.constant 0 : index
    %1 = vector.load %arg2[%c0_1, %c0_2] : memref<576x64xbf16, #tpu.memory_space<vmem>>, vector<576x64xbf16>
    %cst = arith.constant dense<0.000000e+00> : vector<2x64xf32>
    %2 = tpu.matmul %0, %1, %cst {dimension_numbers = #tpu.dot_dimension_numbers<[1], [0], [0], [1], [0, 0, 1, 1], [], []>} : vector<2x576xbf16>, vector<576x64xbf16>, vector<2x64xf32> -> vector<2x64xf32>
    %c0_3 = arith.constant 0 : index
    %c0_4 = arith.constant 0 : index
    %3 = vector.load %arg3[%c0_3, %c0_4] : memref<1x64xf32, #tpu.memory_space<vmem>>, vector<1x64xf32>
    %4 = vector.broadcast %3 : vector<1x64xf32> to vector<2x64xf32>
    %5 = arith.addf %2, %4 : vector<2x64xf32>
    %cst_5 = arith.constant 0.000000e+00 : f32
    %6 = vector.broadcast %cst_5 : f32 to vector<2x64xf32>
    %7 = arith.cmpf ogt, %5, %6 : vector<2x64xf32>
    %cst_6 = arith.constant 0.00999999977 : f32
    %8 = vector.broadcast %cst_6 : f32 to vector<2x64xf32>
    %9 = arith.mulf %8, %5 : vector<2x64xf32>
    %10 = arith.select %7, %5, %9 : vector<2x64xi1>, vector<2x64xf32>
    %11 = arith.truncf %10 : vector<2x64xf32> to vector<2x64xbf16>
    %c0_7 = arith.constant 0 : index
    %c0_8 = arith.constant 0 : index
    %12 = vector.load %arg4[%c0_7, %c0_8] : memref<2x64xbf16, #tpu.memory_space<vmem>>, vector<2x64xbf16>
    tpu.vector_store %arg4[%c0_7, %c0_8], %11 {strides = array<i32>} : memref<2x64xbf16, #tpu.memory_space<vmem>>, vector<2x64xbf16>,
    return
  }
  func.func @transform_0(%arg0: i32) -> (i32, i32) {
    %c0_i32 = arith.constant 0 : i32
    %c0_i32_0 = arith.constant 0 : i32
    return %arg0, %c0_i32 : i32, i32
  }
  func.func @transform_1(%arg0: i32) -> (i32, i32) {
    %c0_i32 = arith.constant 0 : i32
    %c0_i32_0 = arith.constant 0 : i32
    %c0_i32_1 = arith.constant 0 : i32
    return %c0_i32, %c0_i32_0 : i32, i32
  }
  func.func @transform_2(%arg0: i32) -> (i32, i32) {
    %c0_i32 = arith.constant 0 : i32
    %c0_i32_0 = arith.constant 0 : i32
    %c0_i32_1 = arith.constant 0 : i32
    return %c0_i32, %c0_i32_0 : i32, i32
  }
  func.func @transform_3(%arg0: i32) -> (i32, i32) {
    %c0_i32 = arith.constant 0 : i32
    %c0_i32_0 = arith.constant 0 : i32
    return %arg0, %c0_i32 : i32, i32
  }
}

module attributes {stable_mosaic.version = 11 : i64} {
  func.func @_mlp_head_kernel(%arg0: i32, %arg1: memref<2x64xbf16, #tpu.memory_space<vmem>>, %arg2: memref<64x512xbf16, #tpu.memory_space<vmem>>, %arg3: memref<1x512xf32, #tpu.memory_space<vmem>>, %arg4: memref<512x128xbf16, #tpu.memory_space<vmem>>, %arg5: memref<1x128xf32, #tpu.memory_space<vmem>>, %arg6: memref<2x128xf32, #tpu.memory_space<vmem>>) attributes {dimension_semantics = [#tpu.dimension_semantics<parallel>], iteration_bounds = array<i64: 1>, scalar_prefetch = 0 : i64, scratch_operands = 0 : i64, tpu.core_type = #tpu.core_type<tc>, window_params = [{transform_indices = @transform_0, window_bounds = array<i64: 2, 64>}, {pipeline_mode = #tpu.pipeline_mode<synchronous>, transform_indices = @transform_1, window_bounds = array<i64: 64, 512>}, {pipeline_mode = #tpu.pipeline_mode<synchronous>, transform_indices = @transform_2, window_bounds = array<i64: 1, 512>}, {pipeline_mode = #tpu.pipeline_mode<synchronous>, transform_indices = @transform_3, window_bounds = array<i64: 512, 128>}, {pipeline_mode = #tpu.pipeline_mode<synchronous>, transform_indices = @transform_4, window_bounds = array<i64: 1, 128>}, {transform_indices = @transform_5, window_bounds = array<i64: 2, 128>}]} {
    %c0 = arith.constant 0 : index
    %c0_0 = arith.constant 0 : index
    %0 = vector.load %arg1[%c0, %c0_0] : memref<2x64xbf16, #tpu.memory_space<vmem>>, vector<2x64xbf16>
    %c0_1 = arith.constant 0 : index
    %c0_2 = arith.constant 0 : index
    %1 = vector.load %arg2[%c0_1, %c0_2] : memref<64x512xbf16, #tpu.memory_space<vmem>>, vector<64x512xbf16>
    %cst = arith.constant dense<0.000000e+00> : vector<2x512xf32>
    %2 = tpu.matmul %0, %1, %cst {dimension_numbers = #tpu.dot_dimension_numbers<[1], [0], [0], [1], [0, 0, 1, 1], [], []>} : vector<2x64xbf16>, vector<64x512xbf16>, vector<2x512xf32> -> vector<2x512xf32>
    %c0_3 = arith.constant 0 : index
    %c0_4 = arith.constant 0 : index
    %3 = vector.load %arg3[%c0_3, %c0_4] : memref<1x512xf32, #tpu.memory_space<vmem>>, vector<1x512xf32>
    %4 = vector.broadcast %3 : vector<1x512xf32> to vector<2x512xf32>
    %5 = arith.addf %2, %4 : vector<2x512xf32>
    %cst_5 = arith.constant 0.000000e+00 : f32
    %6 = vector.broadcast %cst_5 : f32 to vector<2x512xf32>
    %7 = arith.cmpf ogt, %5, %6 : vector<2x512xf32>
    %cst_6 = arith.constant 0.00999999977 : f32
    %8 = vector.broadcast %cst_6 : f32 to vector<2x512xf32>
    %9 = arith.mulf %8, %5 : vector<2x512xf32>
    %10 = arith.select %7, %5, %9 : vector<2x512xi1>, vector<2x512xf32>
    %11 = arith.truncf %10 : vector<2x512xf32> to vector<2x512xbf16>
    %c0_7 = arith.constant 0 : index
    %c0_8 = arith.constant 0 : index
    %12 = vector.load %arg4[%c0_7, %c0_8] : memref<512x128xbf16, #tpu.memory_space<vmem>>, vector<512x128xbf16>
    %cst_9 = arith.constant dense<0.000000e+00> : vector<2x128xf32>
    %13 = tpu.matmul %11, %12, %cst_9 {dimension_numbers = #tpu.dot_dimension_numbers<[1], [0], [0], [1], [0, 0, 1, 1], [], []>} : vector<2x512xbf16>, vector<512x128xbf16>, vector<2x128xf32> -> vector<2x128xf32>
    %c0_10 = arith.constant 0 : index
    %c0_11 = arith.constant 0 : index
    %14 = vector.load %arg5[%c0_10, %c0_11] : memref<1x128xf32, #tpu.memory_space<vmem>>, vector<1x128xf32>
    %15 = vector.broadcast %14 : vector<1x128xf32> to vector<2x128xf32>
    %16 = arith.addf %13, %15 : vector<2x128xf32>
    %c0_12 = arith.constant 0 : index
    %c0_13 = arith.constant 0 : index
    %17 = vector.load %arg6[%c0_12, %c0_13] : memref<2x128xf32, #tpu.memory_space<vmem>>, vector<2x128xf32>
    tpu.vector_store %arg6[%c0_12, %c0_13], %16 {strides = array<i32>} : memref<2x128xf32, #tpu.memory_space<vmem>>, vector<2x128xf32>,
    return
  }
  func.func @transform_0(%arg0: i32) -> (i32, i32) {
    %c0_i32 = arith.constant 0 : i32
    %c0_i32_0 = arith.constant 0 : i32
    return %arg0, %c0_i32 : i32, i32
  }
  func.func @transform_1(%arg0: i32) -> (i32, i32) {
    %c0_i32 = arith.constant 0 : i32
    %c0_i32_0 = arith.constant 0 : i32
    %c0_i32_1 = arith.constant 0 : i32
    return %c0_i32, %c0_i32_0 : i32, i32
  }
  func.func @transform_2(%arg0: i32) -> (i32, i32) {
    %c0_i32 = arith.constant 0 : i32
    %c0_i32_0 = arith.constant 0 : i32
    %c0_i32_1 = arith.constant 0 : i32
    return %c0_i32, %c0_i32_0 : i32, i32
  }
  func.func @transform_3(%arg0: i32) -> (i32, i32) {
    %c0_i32 = arith.constant 0 : i32
    %c0_i32_0 = arith.constant 0 : i32
    %c0_i32_1 = arith.constant 0 : i32
    return %c0_i32, %c0_i32_0 : i32, i32
  }
  func.func @transform_4(%arg0: i32) -> (i32, i32) {
    %c0_i32 = arith.constant 0 : i32
    %c0_i32_0 = arith.constant 0 : i32
    %c0_i32_1 = arith.constant 0 : i32
    return %c0_i32, %c0_i32_0 : i32, i32
  }
  func.func @transform_5(%arg0: i32) -> (i32, i32) {
    %c0_i32 = arith.constant 0 : i32
    %c0_i32_0 = arith.constant 0 : i32
    return %arg0, %c0_i32 : i32, i32
  }
}

</mosaic_0001>

<llo_original>
// kernel: dqn_forward.4
$region0: #{dqn_forward.4}
  #allocation0 [shape = 'u32[]', space=smem, size = 0x4, offset = 0x4, fixed_abs, tag = 'smem constant byte address 0x4 - core index']
  #allocation1 [shape = 'u32[144,128]{1,0:T(1,128)}', space=vmem, size = 0x12000, scoped, tag = 'internal scratch']
  %s0 = inlined_call_operand.vmem [shape: bf16[162,64], index: 0, kind: input, shape index: {}]
  %s1 = inlined_call_operand.vmem [shape: bf16[64,32], index: 1, kind: input, shape index: {}]
  %s2 = inlined_call_operand.vmem [shape: f32[1,32], index: 2, kind: input, shape index: {}]
  %s3 = inlined_call_operand.vmem [shape: bf16[162,32], index: 3, kind: output, shape index: {}]
  %s4 = sld [smem:[#allocation0]]
  $region89: #{dqn_forward.4} parent=0
    _
  %s6 = ssub.s32 1, %s4
  %s7 = scalar_select 0, %s6, %s4
  $region1: #{dqn_forward.4} parent=0
    #allocation2 [shape = 'u8[65536]{0}', space=vmem, size = 0x10000, scoped, tag = 'output window, operand 0']
    loop: start=0, step=1, limit=4
    $region2: #{dqn_forward.4} parent=1 // loop_pre_header
      _
    $region3: #{dqn_forward.4} parent=1 // loop_header
      %s9 = sphi 0, %s13
      %p10 = scmp.ge.s32.totalorder %s9, 4
      %s19 = sphi 0, %s21
      %s22 = sphi 0, %s19
      %s23 = sphi 0, %s22
      %s39 = sphi 0, %s23
      %s43 = sphi 0, %s43
      %s45 = sphi 0, %s43
      %s46 = sphi 0, %s45
      %s60 = sphi 0, %s46
      %s64 = sphi 0, %s64
      %s66 = sphi 0, %s64
      %s67 = sphi 0, %s66
      %s81 = sphi 0, %s67
      %s87 = sphi 0, %s89
      %s90 = sphi 0, %s87
      %s91 = sphi 0, %s90
      %s107 = sphi 0, %s91
    $region4: #{dqn_forward.4} parent=1 // loop_header_branch
      %12 = sbr.rel (%p10) target = $region8
    $region5: #{dqn_forward.4} parent=1 // loop_body
      %s14 = ssub.s32 %s9, 1
      %s15 = ssub.s32 %s9, 2
      %s16 = sadd.s32 %s9, 1
      %s17 = ssub.s32 %s9, %s16
      %p18 = scmp.eq.s32.totalorder %s17, 0
      %s20 = sadd.s32 %s19, 1
      %s21 = scalar_select %p18, %s19, %s20
      %p24 = pneg %p18
      %p25 = scmp.eq.s32.totalorder %s9, 1
      %p26 = por %p24, %p25
      %p27 = scmp.ne.s32.totalorder %s19, %s22
      %p28 = scmp.eq.s32.totalorder %s9, 0
      %p29 = por %p27, %p28
      %p30 = scmp.ne.s32.totalorder %s19, %s22
      %p31 = scmp.eq.s32.totalorder %s14, 1
      %p32 = por %p30, %p31
      %p33 = scmp.ne.s32.totalorder %s22, %s23
      %p34 = scmp.eq.s32.totalorder %s14, 0
      %p35 = por %p33, %p34
      %p36 = scmp.ne.s32.totalorder %s22, %s23
      %p37 = scmp.eq.s32.totalorder %s15, 1
      %p38 = por %p36, %p37
      %p40 = scmp.ne.s32.totalorder %s23, %s39
      %p41 = scmp.eq.s32.totalorder %s15, 0
      %p42 = por %p40, %p41
      %s44 = sadd.s32 %s43, 1
      %p47 = scmp.eq.s32.totalorder %s9, 1
      %p48 = scmp.ne.s32.totalorder %s43, %s45
      %p49 = scmp.eq.s32.totalorder %s9, 0
      %p50 = por %p48, %p49
      %p51 = scmp.ne.s32.totalorder %s43, %s45
      %p52 = scmp.eq.s32.totalorder %s14, 1
      %p53 = por %p51, %p52
      %p54 = scmp.ne.s32.totalorder %s45, %s46
      %p55 = scmp.eq.s32.totalorder %s14, 0
      %p56 = por %p54, %p55
      %p57 = scmp.ne.s32.totalorder %s45, %s46
      %p58 = scmp.eq.s32.totalorder %s15, 1
      %p59 = por %p57, %p58
      %p61 = scmp.ne.s32.totalorder %s46, %s60
      %p62 = scmp.eq.s32.totalorder %s15, 0
      %p63 = por %p61, %p62
      %s65 = sadd.s32 %s64, 1
      %p68 = scmp.eq.s32.totalorder %s9, 1
      %p69 = scmp.ne.s32.totalorder %s64, %s66
      %p70 = scmp.eq.s32.totalorder %s9, 0
      %p71 = por %p69, %p70
      %p72 = scmp.ne.s32.totalorder %s64, %s66
      %p73 = scmp.eq.s32.totalorder %s14, 1
      %p74 = por %p72, %p73
      %p75 = scmp.ne.s32.totalorder %s66, %s67
      %p76 = scmp.eq.s32.totalorder %s14, 0
      %p77 = por %p75, %p76
      %p78 = scmp.ne.s32.totalorder %s66, %s67
      %p79 = scmp.eq.s32.totalorder %s15, 1
      %p80 = por %p78, %p79
      %p82 = scmp.ne.s32.totalorder %s67, %s81
      %p83 = scmp.eq.s32.totalorder %s15, 0
      %p84 = por %p82, %p83
      %s85 = ssub.s32 %s9, %s16
      %p86 = scmp.eq.s32.totalorder %s85, 0
      %s88 = sadd.s32 %s87, 1
      %s89 = scalar_select %p86, %s87, %s88
      %p92 = pneg %p86
      %p93 = scmp.eq.s32.totalorder %s9, 1
      %p94 = por %p92, %p93
      %p95 = scmp.ne.s32.totalorder %s87, %s90
      %p96 = scmp.eq.s32.totalorder %s9, 0
      %p97 = por %p95, %p96
      %p98 = scmp.ne.s32.totalorder %s87, %s90
      %p99 = scmp.eq.s32.totalorder %s14, 1
      %p100 = por %p98, %p99
      %p101 = scmp.ne.s32.totalorder %s90, %s91
      %p102 = scmp.eq.s32.totalorder %s14, 0
      %p103 = por %p101, %p102
      %p104 = scmp.ne.s32.totalorder %s90, %s91
      %p105 = scmp.eq.s32.totalorder %s15, 1
      %p106 = por %p104, %p105
      %p108 = scmp.ne.s32.totalorder %s91, %s107
      %p109 = scmp.eq.s32.totalorder %s15, 0
      %p110 = por %p108, %p109
      %p111 = scmp.le.s32.totalorder 1, %s9
      %p112 = scmp.lt.s32.totalorder %s9, 3
      %p113 = pnand %p111, %p112
      %p114 = pneg %p113
      // Predicated region
      $region9: #{dqn_forward.4} parent=5 // pred_check
        _
      $region10: #{dqn_forward.4} parent=5 // pred_check_branch
        %116 = sbr.rel (%p113) target = $region12
      $region11: #{dqn_forward.4} parent=5 // pred_region
        %s117 = ssub.s32 %s9, 1
        // Predicated region
        $region13: #{dqn_forward.4} parent=11 // pred_check
          %p118 = pneg %p56
        $region14: #{dqn_forward.4} parent=11 // pred_check_branch
          %120 = sbr.rel (%p118) target = $region16
        $region15: #{dqn_forward.4} parent=11 // pred_region
          _
        $region16: #{dqn_forward.4} parent=11 // pred_fallthru
          _
        // Predicated region
        $region17: #{dqn_forward.4} parent=11 // pred_check
          %p121 = pneg %p77
        $region18: #{dqn_forward.4} parent=11 // pred_check_branch
          %123 = sbr.rel (%p121) target = $region20
        $region19: #{dqn_forward.4} parent=11 // pred_region
          _
        $region20: #{dqn_forward.4} parent=11 // pred_fallthru
          _
      $region12: #{dqn_forward.4} parent=5 // pred_fallthru
        _
      %p124 = scmp.lt.s32.totalorder %s9, 2
      // Predicated region
      $region21: #{dqn_forward.4} parent=5 // pred_check
        %p125 = pneg %p124
      $region22: #{dqn_forward.4} parent=5 // pred_check_branch
        %127 = sbr.rel (%p125) target = $region24
      $region23: #{dqn_forward.4} parent=5 // pred_region
        // Predicated region
        $region25: #{dqn_forward.4} parent=23 // pred_check
          %p128 = pneg %p29
        $region26: #{dqn_forward.4} parent=23 // pred_check_branch
          %130 = sbr.rel (%p128) target = $region28
        $region27: #{dqn_forward.4} parent=23 // pred_region
          %s131 = smul.u32 16, %s9
          %s132 = ssub.s32 21, %s131
          %p133 = scmp.lt.s32.totalorder %s132, 16
          %s134 = scalar_select %p133, %s132, 16
          %s135 = smul.u32 64, %s134
          %p136 = scmp.lt.s32.totalorder %s131, 20
          %s137 = scalar_select %p136, %s131, 20
          %s138 = smul.addr %s137, 4
          %s139 = scalar_lea.vmem %s0, %s138
          %s140 = smul.u32 16, %s9
          %s141 = ssub.s32 21, %s140
          %p142 = scmp.lt.s32.totalorder %s141, 16
          %s143 = scalar_select %p142, %s141, 16
          %s144 = smul.u32 64, %s143
        $region28: #{dqn_forward.4} parent=23 // pred_fallthru
          _
      $region24: #{dqn_forward.4} parent=5 // pred_fallthru
        _
      %p145 = scmp.le.s32.totalorder 1, %s9
      %p146 = scmp.lt.s32.totalorder %s9, 3
      %p147 = pnand %p145, %p146
      %p148 = pneg %p147
      // Predicated region
      $region29: #{dqn_forward.4} parent=5 // pred_check
        _
      $region30: #{dqn_forward.4} parent=5 // pred_check_branch
        %150 = sbr.rel (%p147) target = $region32
      $region31: #{dqn_forward.4} parent=5 // pred_region
        %s151 = ssub.s32 %s9, 1
        %s152 = smul.u32 16, %s14
        %s153 = ssub.s32 21, %s152
        %p154 = scmp.lt.s32.totalorder %s153, 16
        %s155 = scalar_select %p154, %s153, 16
        %s156 = smul.u32 64, %s155
        %p157 = scmp.lt.s32.totalorder %s152, 20
        %s158 = scalar_select %p157, %s152, 20
        %s159 = smul.addr %s158, 4
        %s160 = scalar_lea.vmem %s0, %s159
        %p161 = pneg %p35
        %p162 = pneg %p32
        %p163 = pneg %p56
        %p164 = pneg %p53
        %p165 = pneg %p77
        %p166 = pneg %p74
        %p167 = pneg %p103
        %p168 = pneg %p100
        %s169 = sand.u32 %s90, 1
        %s170 = sand.u32 %s90, 1
        %s171 = smul.addr %s170, 64
        %s172 = scalar_lea.vmem [#allocation2], %s171
        %s173 = smul.u32 16, %s14
        %s174 = ssub.s32 21, %s173
        %p175 = scmp.lt.s32.totalorder %s174, 16
        %s176 = scalar_select %p175, %s174, 16
        %s177 = smul.u32 64, %s176
        %p178 = scmp.lt.s32.totalorder %s173, 20
        %s179 = scalar_select %p178, %s173, 20
        %s180 = smul.addr %s179, 4
        %s181 = scalar_lea.vmem %s0, %s180
        %s182 = smul.u32 16, %s14
        %s183 = ssub.s32 21, %s182
        %p184 = scmp.lt.s32.totalorder %s183, 16
        %s185 = scalar_select %p184, %s183, 16
        %s186 = smul.u32 64, %s185
        %s187 = smul.u32 16, %s14
        %s188 = ssub.s32 21, %s187
        %p189 = scmp.lt.s32.totalorder %s188, 16
        %s190 = scalar_select %p189, %s188, 16
        %s191 = smul.u32 64, %s190
        %v193 = vld [vmem:[%s181] sm:$0xf]
        %v194 = vld [vmem:[%s181 + $0x4] sm:$0xf]
        %v195 = vld [vmem:[%s181 + $0x8] sm:$0xf]
        %v196 = vld [vmem:[%s181 + $0xc] sm:$0xf]
        %v197 = vld [vmem:[%s181 + $0x10] sm:$0xf]
        %v198 = vld [vmem:[%s181 + $0x14] sm:$0xf]
        %v199 = vld [vmem:[%s181 + $0x18] sm:$0xf]
        %v200 = vld [vmem:[%s181 + $0x1c] sm:$0xf]
        %v201 = vld [vmem:[%s181 + $0x20] sm:$0xf]
        %v202 = vld [vmem:[%s181 + $0x24] sm:$0xf]
        %v203 = vld [vmem:[%s181 + $0x28] sm:$0xf]
        %v204 = vld [vmem:[%s181 + $0x2c] sm:$0xf]
        %v205 = vld [vmem:[%s181 + $0x30] sm:$0xf]
        %v206 = vld [vmem:[%s181 + $0x34] sm:$0xf]
        %v207 = vld [vmem:[%s181 + $0x38] sm:$0xf]
        %v208 = vld [vmem:[%s181 + $0x3c] sm:$0xf]
        %v209 = vld [vmem:[%s1] sm:$0xf]
        %v210 = vld [vmem:[%s1 + $0x4] sm:$0xf]
        %v211 = vld [vmem:[%s1 + $0x8] sm:$0xf]
        %v212 = vld [vmem:[%s1 + $0xc] sm:$0xf]
        %v213 = vld [vmem:[%s1 + $0x10] sm:$0xf]
        %v214 = vld [vmem:[%s1 + $0x14] sm:$0xf]
        %v215 = vld [vmem:[%s1 + $0x18] sm:$0xf]
        %v216 = vld [vmem:[%s1 + $0x1c] sm:$0xf]
        %v217 = vld [vmem:[%s2] sm:$0x1]
        %v219 = vlaneseq
        %v220 = vshrl.u32 %v219, 7
        %v221 = vsub.s32 0, %v220
        %v222 = vrot.slane %v217, %v221
        %v240 = vunpack.c.l.b16 %v193
        %v241 = vunpack.c.l.b16 %v194
        %v242 = vunpack.c.l.b16 %v195
        %v243 = vunpack.c.l.b16 %v196
        %v244 = vunpack.c.l.b16 %v197
        %v245 = vunpack.c.l.b16 %v198
        %v246 = vunpack.c.l.b16 %v199
        %v247 = vunpack.c.l.b16 %v200
        %v248 = vunpack.c.l.b16 %v201
        %v249 = vunpack.c.l.b16 %v202
        %v250 = vunpack.c.l.b16 %v203
        %v251 = vunpack.c.l.b16 %v204
        %v252 = vunpack.c.l.b16 %v205
        %v253 = vunpack.c.l.b16 %v206
        %v254 = vunpack.c.l.b16 %v207
        %v255 = vunpack.c.l.b16 %v208
        %v256 = vpack.c.b16 %v241, %v240
        %v257 = vpack.c.b16 %v243, %v242
        %v258 = vpack.c.b16 %v245, %v244
        %v259 = vpack.c.b16 %v247, %v246
        %v260 = vpack.c.b16 %v249, %v248
        %v261 = vpack.c.b16 %v251, %v250
        %v262 = vpack.c.b16 %v253, %v252
        %v263 = vpack.c.b16 %v255, %v254
        %v272 = vunpack.c.l.b16 %v209
        %v273 = vunpack.c.l.b16 %v210
        %v274 = vunpack.c.l.b16 %v211
        %v275 = vunpack.c.l.b16 %v212
        %v276 = vunpack.c.l.b16 %v213
        %v277 = vunpack.c.l.b16 %v214
        %v278 = vunpack.c.l.b16 %v215
        %v279 = vunpack.c.l.b16 %v216
        %v280 = vpack.c.b16 %v273, %v272
        %v281 = vpack.c.b16 %v275, %v274
        %v282 = vpack.c.b16 %v277, %v276
        %v283 = vpack.c.b16 %v279, %v278
        %vm288 = vcmask 523264
        %v290 = vsel %vm288, %v256, 0
        %v293 = vsel %vm288, %v257, 0
        %v296 = vsel %vm288, %v258, 0
        %v299 = vsel %vm288, %v259, 0
        %v302 = vsel %vm288, %v260, 0
        %v305 = vsel %vm288, %v261, 0
        %v308 = vsel %vm288, %v262, 0
        %v311 = vsel %vm288, %v263, 0
        %313 = vmatprep.subr.bf16.mxu0 0
        %314 = vmatpush1.bf16.msra.mxu0 %v280
        %315 = vmatprep.subr.bf16.mxu0 0
        %316 = vmatpush1.bf16.msra.mxu0 %v281
        %317 = vmatprep.subr.bf16.mxu0 0
        %318 = vmatpush1.bf16.msra.mxu0 %v282
        %319 = vmatprep.subr.bf16.mxu0 0
        %320 = vmatpush1.bf16.msra.mxu0 %v283
        %321 = vmatprep.subr.bf16.mxu0 0
        %322 = vmatpush1.bf16.msra.mxu0 0
        %323 = vmatprep.subr.bf16.mxu0 0
        %324 = vmatpush1.bf16.msra.mxu0 0
        %325 = vmatprep.subr.bf16.mxu0 0
        %326 = vmatpush1.bf16.msra.mxu0 0
        %327 = vmatprep.subr.bf16.mxu0 0
        %328 = vmatpush1.bf16.msra.mxu0 0
        %329 = vmatprep.subr.bf16.mxu0 0
        %330 = vmatpush1.bf16.msra.mxu0 0
        %331 = vmatprep.subr.bf16.mxu0 0
        %332 = vmatpush1.bf16.msra.mxu0 0
        %333 = vmatprep.subr.bf16.mxu0 0
        %334 = vmatpush1.bf16.msra.mxu0 0
        %335 = vmatprep.subr.bf16.mxu0 0
        %336 = vmatpush1.bf16.msra.mxu0 0
        %337 = vmatprep.subr.bf16.mxu0 0
        %338 = vmatpush1.bf16.msra.mxu0 0
        %339 = vmatprep.subr.bf16.mxu0 0
        %340 = vmatpush1.bf16.msra.mxu0 0
        %341 = vmatprep.subr.bf16.mxu0 0
        %342 = vmatpush1.bf16.msra.mxu0 0
        %343 = vmatprep.subr.bf16.mxu0 0
        %344 = vmatpush1.bf16.msra.mxu0 0
        %345 = vmatprep.mubr.bf16.mxu0 0
        %346 = vmatmul.mubr.bf16.gmra.mrb[0].mxu0 %v290
        %v347 = vpop.f32.mrb[0].mxu0
        %v348 = vadd.f32 %v222, %v347
        %v349 = vpop.f32.mrb[0].mxu0
        %v350 = vpop.f32.mrb[0].mxu0
        %v351 = vadd.f32 %v222, %v350
        %v352 = vpop.f32.mrb[0].mxu0
        %353 = vmatprep.mubr.bf16.mxu0 0
        %354 = vmatmul.mubr.bf16.gmra.mrb[0].mxu0 %v293
        %v355 = vpop.f32.mrb[0].mxu0
        %v356 = vadd.f32 %v222, %v355
        %v357 = vpop.f32.mrb[0].mxu0
        %v358 = vpop.f32.mrb[0].mxu0
        %v359 = vadd.f32 %v222, %v358
        %v360 = vpop.f32.mrb[0].mxu0
        %361 = vmatprep.mubr.bf16.mxu0 0
        %362 = vmatmul.mubr.bf16.gmra.mrb[0].mxu0 %v296
        %v363 = vpop.f32.mrb[0].mxu0
        %v364 = vadd.f32 %v222, %v363
        %v365 = vpop.f32.mrb[0].mxu0
        %v366 = vpop.f32.mrb[0].mxu0
        %v367 = vadd.f32 %v222, %v366
        %v368 = vpop.f32.mrb[0].mxu0
        %369 = vmatprep.mubr.bf16.mxu0 0
        %370 = vmatmul.mubr.bf16.gmra.mrb[0].mxu0 %v299
        %v371 = vpop.f32.mrb[0].mxu0
        %v372 = vadd.f32 %v222, %v371
        %v373 = vpop.f32.mrb[0].mxu0
        %v374 = vpop.f32.mrb[0].mxu0
        %v375 = vadd.f32 %v222, %v374
        %v376 = vpop.f32.mrb[0].mxu0
        %377 = vmatprep.mubr.bf16.mxu0 0
        %378 = vmatmul.mubr.bf16.gmra.mrb[0].mxu0 %v302
        %v379 = vpop.f32.mrb[0].mxu0
        %v380 = vadd.f32 %v222, %v379
        %v381 = vpop.f32.mrb[0].mxu0
        %v382 = vpop.f32.mrb[0].mxu0
        %v383 = vadd.f32 %v222, %v382
        %v384 = vpop.f32.mrb[0].mxu0
        %385 = vmatprep.mubr.bf16.mxu0 0
        %386 = vmatmul.mubr.bf16.gmra.mrb[0].mxu0 %v305
        %v387 = vpop.f32.mrb[0].mxu0
        %v388 = vadd.f32 %v222, %v387
        %v389 = vpop.f32.mrb[0].mxu0
        %v390 = vpop.f32.mrb[0].mxu0
        %v391 = vadd.f32 %v222, %v390
        %v392 = vpop.f32.mrb[0].mxu0
        %393 = vmatprep.mubr.bf16.mxu0 0
        %394 = vmatmul.mubr.bf16.gmra.mrb[0].mxu0 %v308
        %v395 = vpop.f32.mrb[0].mxu0
        %v396 = vadd.f32 %v222, %v395
        %v397 = vpop.f32.mrb[0].mxu0
        %v398 = vpop.f32.mrb[0].mxu0
        %v399 = vadd.f32 %v222, %v398
        %v400 = vpop.f32.mrb[0].mxu0
        %401 = vmatprep.mubr.bf16.mxu0 0
        %402 = vmatmul.mubr.bf16.gmra.mrb[0].mxu0 %v311
        %v403 = vpop.f32.mrb[0].mxu0
        %v404 = vadd.f32 %v222, %v403
        %v405 = vpop.f32.mrb[0].mxu0
        %v406 = vpop.f32.mrb[0].mxu0
        %v407 = vadd.f32 %v222, %v406
        %v408 = vpop.f32.mrb[0].mxu0
        %409 = vdwg.mxu0
        %vm410 = vcmp.gt.f32.partialorder %v348, 0.0
        %vm411 = vcmp.gt.f32.partialorder %v351, 0.0
        %vm412 = vcmp.gt.f32.partialorder %v356, 0.0
        %vm413 = vcmp.gt.f32.partialorder %v359, 0.0
        %vm414 = vcmp.gt.f32.partialorder %v364, 0.0
        %vm415 = vcmp.gt.f32.partialorder %v367, 0.0
        %vm416 = vcmp.gt.f32.partialorder %v372, 0.0
        %vm417 = vcmp.gt.f32.partialorder %v375, 0.0
        %vm418 = vcmp.gt.f32.partialorder %v380, 0.0
        %vm419 = vcmp.gt.f32.partialorder %v383, 0.0
        %vm420 = vcmp.gt.f32.partialorder %v388, 0.0
        %vm421 = vcmp.gt.f32.partialorder %v391, 0.0
        %vm422 = vcmp.gt.f32.partialorder %v396, 0.0
        %vm423 = vcmp.gt.f32.partialorder %v399, 0.0
        %vm424 = vcmp.gt.f32.partialorder %v404, 0.0
        %vm425 = vcmp.gt.f32.partialorder %v407, 0.0
        %v426 = vmul.f32 %v348, 0.01
        %v427 = vmul.f32 %v351, 0.01
        %v428 = vmul.f32 %v356, 0.01
        %v429 = vmul.f32 %v359, 0.01
        %v430 = vmul.f32 %v364, 0.01
        %v431 = vmul.f32 %v367, 0.01
        %v432 = vmul.f32 %v372, 0.01
        %v433 = vmul.f32 %v375, 0.01
        %v434 = vmul.f32 %v380, 0.01
        %v435 = vmul.f32 %v383, 0.01
        %v436 = vmul.f32 %v388, 0.01
        %v437 = vmul.f32 %v391, 0.01
        %v438 = vmul.f32 %v396, 0.01
        %v439 = vmul.f32 %v399, 0.01
        %v440 = vmul.f32 %v404, 0.01
        %v441 = vmul.f32 %v407, 0.01
        %v442 = vsel %vm410, %v348, %v426
        %v443 = vsel %vm411, %v351, %v427
        %v444 = vsel %vm412, %v356, %v428
        %v445 = vsel %vm413, %v359, %v429
        %v446 = vsel %vm414, %v364, %v430
        %v447 = vsel %vm415, %v367, %v431
        %v448 = vsel %vm416, %v372, %v432
        %v449 = vsel %vm417, %v375, %v433
        %v450 = vsel %vm418, %v380, %v434
        %v451 = vsel %vm419, %v383, %v435
        %v452 = vsel %vm420, %v388, %v436
        %v453 = vsel %vm421, %v391, %v437
        %v454 = vsel %vm422, %v396, %v438
        %v455 = vsel %vm423, %v399, %v439
        %v456 = vsel %vm424, %v404, %v440
        %v457 = vsel %vm425, %v407, %v441
        %v458 = vpack.c.bf16 %v443, %v442
        %v459 = vpack.c.bf16 %v445, %v444
        %v460 = vpack.c.bf16 %v447, %v446
        %v461 = vpack.c.bf16 %v449, %v448
        %v462 = vpack.c.bf16 %v451, %v450
        %v463 = vpack.c.bf16 %v453, %v452
        %v464 = vpack.c.bf16 %v455, %v454
        %v465 = vpack.c.bf16 %v457, %v456
        %v474 = vunpack.c.l.b16 %v458
        %v475 = vunpack.c.h.b16 %v458
        %v476 = vunpack.c.l.b16 %v459
        %v477 = vunpack.c.h.b16 %v459
        %v478 = vunpack.c.l.b16 %v460
        %v479 = vunpack.c.h.b16 %v460
        %v480 = vunpack.c.l.b16 %v461
        %v481 = vunpack.c.h.b16 %v461
        %v482 = vunpack.c.l.b16 %v462
        %v483 = vunpack.c.h.b16 %v462
        %v484 = vunpack.c.l.b16 %v463
        %v485 = vunpack.c.h.b16 %v463
        %v486 = vunpack.c.l.b16 %v464
        %v487 = vunpack.c.h.b16 %v464
        %v488 = vunpack.c.l.b16 %v465
        %v489 = vunpack.c.h.b16 %v465
        %v490 = vpack.c.b16 %v474, %v474
        %v491 = vpack.c.b16 %v475, %v475
        %v492 = vpack.c.b16 %v476, %v476
        %v493 = vpack.c.b16 %v477, %v477
        %v494 = vpack.c.b16 %v478, %v478
        %v495 = vpack.c.b16 %v479, %v479
        %v496 = vpack.c.b16 %v480, %v480
        %v497 = vpack.c.b16 %v481, %v481
        %v498 = vpack.c.b16 %v482, %v482
        %v499 = vpack.c.b16 %v483, %v483
        %v500 = vpack.c.b16 %v484, %v484
        %v501 = vpack.c.b16 %v485, %v485
        %v502 = vpack.c.b16 %v486, %v486
        %v503 = vpack.c.b16 %v487, %v487
        %v504 = vpack.c.b16 %v488, %v488
        %v505 = vpack.c.b16 %v489, %v489
        %vm522 = vcmask 257024
        %523 = vst.msk [vmem:[%s172] sm:$0xf] %vm522, %v490
        %524 = vst.msk [vmem:[%s172 + $0x4] sm:$0xf] %vm522, %v491
        %525 = vst.msk [vmem:[%s172 + $0x8] sm:$0xf] %vm522, %v492
        %526 = vst.msk [vmem:[%s172 + $0xc] sm:$0xf] %vm522, %v493
        %527 = vst.msk [vmem:[%s172 + $0x10] sm:$0xf] %vm522, %v494
        %528 = vst.msk [vmem:[%s172 + $0x14] sm:$0xf] %vm522, %v495
        %529 = vst.msk [vmem:[%s172 + $0x18] sm:$0xf] %vm522, %v496
        %530 = vst.msk [vmem:[%s172 + $0x1c] sm:$0xf] %vm522, %v497
        %531 = vst.msk [vmem:[%s172 + $0x20] sm:$0xf] %vm522, %v498
        %532 = vst.msk [vmem:[%s172 + $0x24] sm:$0xf] %vm522, %v499
        %533 = vst.msk [vmem:[%s172 + $0x28] sm:$0xf] %vm522, %v500
        %534 = vst.msk [vmem:[%s172 + $0x2c] sm:$0xf] %vm522, %v501
        %535 = vst.msk [vmem:[%s172 + $0x30] sm:$0xf] %vm522, %v502
        %536 = vst.msk [vmem:[%s172 + $0x34] sm:$0xf] %vm522, %v503
        %537 = vst.msk [vmem:[%s172 + $0x38] sm:$0xf] %vm522, %v504
        %538 = vst.msk [vmem:[%s172 + $0x3c] sm:$0xf] %vm522, %v505
        %s539 = sand.u32 %s90, 1
        %s540 = sand.u32 %s90, 1
        %s541 = smul.addr %s540, 64
        %s542 = scalar_lea.vmem [#allocation2], %s541
        // Predicated region
        $region33: #{dqn_forward.4} parent=31 // pred_check
          %p543 = pneg %p100
        $region34: #{dqn_forward.4} parent=31 // pred_check_branch
          %545 = sbr.rel (%p543) target = $region36
        $region35: #{dqn_forward.4} parent=31 // pred_region
          %s546 = smul.u32 16, %s14
          %s547 = ssub.s32 21, %s546
          %p548 = scmp.lt.s32.totalorder %s547, 16
          %s549 = scalar_select %p548, %s547, 16
          %s550 = smul.u32 64, %s549
          %p551 = scmp.ne.s32.totalorder 0, %s550
          %s552 = smul.addr %s546, 4
          %s553 = scalar_lea.vmem %s3, %s552
          // Predicated region
          $region37: #{dqn_forward.4} parent=35 // pred_check
            %p554 = pneg %p551
          $region38: #{dqn_forward.4} parent=35 // pred_check_branch
            %556 = sbr.rel (%p554) target = $region40
          $region39: #{dqn_forward.4} parent=35 // pred_region
            // Predicated region
            $region41: #{dqn_forward.4} parent=39 // pred_check
              _
            $region42: #{dqn_forward.4} parent=39 // pred_check_branch
              %558 = sbr.rel target = $region44
            $region43: #{dqn_forward.4} parent=39 // pred_region
              // Predicated region
              $region63: #{dqn_forward.4} parent=43 // pred_check
                _
              $region64: #{dqn_forward.4} parent=43 // pred_check_branch
                %637 = sbr.rel (0) target = $region66
              $region65: #{dqn_forward.4} parent=43 // pred_region
                %s639 = sshrl.u32 %s549, 4
                // While loop
                $region67: #{dqn_forward.4} parent=65 // loop_pre_header
                  _
                $region68: #{dqn_forward.4} parent=65 // loop_header
                  %s641 = sphi 0, %s643
                  %p642 = scmp.ge.s32.totalorder %s641, %s639
                  %s646 = sphi 0, %s683
                  %s647 = sphi %s542, %s686
                  %s648 = sphi %s553, %s687
                $region69: #{dqn_forward.4} parent=65 // loop_header_branch
                  %645 = sbr.rel (%p642) target = $region73
                $region70: #{dqn_forward.4} parent=65 // loop_body
                  %v649 = vld [vmem:[%s647] sm:$0xf]
                  %650 = vst [vmem:[%s648] sm:$0xf] %v649
                  %v651 = vld [vmem:[%s647 + $0x4] sm:$0xf]
                  %652 = vst [vmem:[%s648 + $0x4] sm:$0xf] %v651
                  %v653 = vld [vmem:[%s647 + $0x8] sm:$0xf]
                  %654 = vst [vmem:[%s648 + $0x8] sm:$0xf] %v653
                  %v655 = vld [vmem:[%s647 + $0xc] sm:$0xf]
                  %656 = vst [vmem:[%s648 + $0xc] sm:$0xf] %v655
                  %v657 = vld [vmem:[%s647 + $0x10] sm:$0xf]
                  %658 = vst [vmem:[%s648 + $0x10] sm:$0xf] %v657
                  %v659 = vld [vmem:[%s647 + $0x14] sm:$0xf]
                  %660 = vst [vmem:[%s648 + $0x14] sm:$0xf] %v659
                  %v661 = vld [vmem:[%s647 + $0x18] sm:$0xf]
                  %662 = vst [vmem:[%s648 + $0x18] sm:$0xf] %v661
                  %v663 = vld [vmem:[%s647 + $0x1c] sm:$0xf]
                  %664 = vst [vmem:[%s648 + $0x1c] sm:$0xf] %v663
                  %v665 = vld [vmem:[%s647 + $0x20] sm:$0xf]
                  %666 = vst [vmem:[%s648 + $0x20] sm:$0xf] %v665
                  %v667 = vld [vmem:[%s647 + $0x24] sm:$0xf]
                  %668 = vst [vmem:[%s648 + $0x24] sm:$0xf] %v667
                  %v669 = vld [vmem:[%s647 + $0x28] sm:$0xf]
                  %670 = vst [vmem:[%s648 + $0x28] sm:$0xf] %v669
                  %v671 = vld [vmem:[%s647 + $0x2c] sm:$0xf]
                  %672 = vst [vmem:[%s648 + $0x2c] sm:$0xf] %v671
                  %v673 = vld [vmem:[%s647 + $0x30] sm:$0xf]
                  %674 = vst [vmem:[%s648 + $0x30] sm:$0xf] %v673
                  %v675 = vld [vmem:[%s647 + $0x34] sm:$0xf]
                  %676 = vst [vmem:[%s648 + $0x34] sm:$0xf] %v675
                  %v677 = vld [vmem:[%s647 + $0x38] sm:$0xf]
                  %678 = vst [vmem:[%s648 + $0x38] sm:$0xf] %v677
                  %v679 = vld [vmem:[%s647 + $0x3c] sm:$0xf]
                  %680 = vst [vmem:[%s648 + $0x3c] sm:$0xf] %v679
                  %s681 = sadd.s32 1, %s646
                  %p682 = scmp.ge.s32.totalorder %s681, %s639
                  %s683 = scalar_select %p682, 0, %s681
                  %s684 = smul.u32 %s683, 64
                  %s685 = smul.u32 %s683, 64
                  %s686 = scalar_lea.vmem %s542, %s684 [#allocation2]
                  %s687 = scalar_lea.vmem %s553, %s685
                $region71: #{dqn_forward.4} parent=65 // loop_footer
                  %s643 = sadd.s32 %s641, 1
                $region72: #{dqn_forward.4} parent=65 // loop_footer_branch
                  %640 = sbr.rel target = $region68
                $region73: #{dqn_forward.4} parent=65 // loop_exit
                  _
                %s688 = sshrl.u32 %s549, 4
                %s689 = sand.u32 %s549, 15
                %s690 = smul.u32 %s688, 16
                %s691 = smul.u32 4, %s690
                %s692 = scalar_lea.vmem %s542, %s691 [#allocation2]
                %s693 = smul.u32 4, %s690
                %s694 = scalar_lea.vmem %s553, %s693
                // While loop
                $region74: #{dqn_forward.4} parent=65 // loop_pre_header
                  _
                $region75: #{dqn_forward.4} parent=65 // loop_header
                  %s696 = sphi 0, %s698
                  %p697 = scmp.ge.s32.totalorder %s696, %s689
                  %s701 = sphi 0, %s708
                  %s702 = sphi %s692, %s711
                  %s703 = sphi %s694, %s712
                $region76: #{dqn_forward.4} parent=65 // loop_header_branch
                  %700 = sbr.rel (%p697) target = $region80
                $region77: #{dqn_forward.4} parent=65 // loop_body
                  %v704 = vld [vmem:[%s702] sm:$0xf]
                  %705 = vst [vmem:[%s703] sm:$0xf] %v704
                  %s706 = sadd.s32 1, %s701
                  %p707 = scmp.ge.s32.totalorder %s706, %s689
                  %s708 = scalar_select %p707, 0, %s706
                  %s709 = smul.u32 %s708, 4
                  %s710 = smul.u32 %s708, 4
                  %s711 = scalar_lea.vmem %s692, %s709 [#allocation2]
                  %s712 = scalar_lea.vmem %s694, %s710
                $region78: #{dqn_forward.4} parent=65 // loop_footer
                  %s698 = sadd.s32 %s696, 1
                $region79: #{dqn_forward.4} parent=65 // loop_footer_branch
                  %695 = sbr.rel target = $region75
                $region80: #{dqn_forward.4} parent=65 // loop_exit
                  _
              $region66: #{dqn_forward.4} parent=43 // pred_fallthru
                _
            $region44: #{dqn_forward.4} parent=39 // pred_fallthru
              _
            // Predicated region
            $region45: #{dqn_forward.4} parent=39 // pred_check
              _
            $region46: #{dqn_forward.4} parent=39 // pred_check_branch
              %560 = sbr.rel (0) target = $region48
            $region47: #{dqn_forward.4} parent=39 // pred_region
              %s562 = sshrl.u32 %s549, 4
              // While loop
              $region49: #{dqn_forward.4} parent=47 // loop_pre_header
                _
              $region50: #{dqn_forward.4} parent=47 // loop_header
                %s564 = sphi 0, %s566
                %p565 = scmp.ge.s32.totalorder %s564, %s562
                %s569 = sphi 0, %s606
                %s570 = sphi %s542, %s609
                %s571 = sphi %s553, %s610
              $region51: #{dqn_forward.4} parent=47 // loop_header_branch
                %568 = sbr.rel (%p565) target = $region55
              $region52: #{dqn_forward.4} parent=47 // loop_body
                %v572 = vld [vmem:[%s570] sm:$0xf]
                %573 = vst [vmem:[%s571] sm:$0xf] %v572
                %v574 = vld [vmem:[%s570 + $0x4] sm:$0xf]
                %575 = vst [vmem:[%s571 + $0x4] sm:$0xf] %v574
                %v576 = vld [vmem:[%s570 + $0x8] sm:$0xf]
                %577 = vst [vmem:[%s571 + $0x8] sm:$0xf] %v576
                %v578 = vld [vmem:[%s570 + $0xc] sm:$0xf]
                %579 = vst [vmem:[%s571 + $0xc] sm:$0xf] %v578
                %v580 = vld [vmem:[%s570 + $0x10] sm:$0xf]
                %581 = vst [vmem:[%s571 + $0x10] sm:$0xf] %v580
                %v582 = vld [vmem:[%s570 + $0x14] sm:$0xf]
                %583 = vst [vmem:[%s571 + $0x14] sm:$0xf] %v582
                %v584 = vld [vmem:[%s570 + $0x18] sm:$0xf]
                %585 = vst [vmem:[%s571 + $0x18] sm:$0xf] %v584
                %v586 = vld [vmem:[%s570 + $0x1c] sm:$0xf]
                %587 = vst [vmem:[%s571 + $0x1c] sm:$0xf] %v586
                %v588 = vld [vmem:[%s570 + $0x20] sm:$0xf]
                %589 = vst [vmem:[%s571 + $0x20] sm:$0xf] %v588
                %v590 = vld [vmem:[%s570 + $0x24] sm:$0xf]
                %591 = vst [vmem:[%s571 + $0x24] sm:$0xf] %v590
                %v592 = vld [vmem:[%s570 + $0x28] sm:$0xf]
                %593 = vst [vmem:[%s571 + $0x28] sm:$0xf] %v592
                %v594 = vld [vmem:[%s570 + $0x2c] sm:$0xf]
                %595 = vst [vmem:[%s571 + $0x2c] sm:$0xf] %v594
                %v596 = vld [vmem:[%s570 + $0x30] sm:$0xf]
                %597 = vst [vmem:[%s571 + $0x30] sm:$0xf] %v596
                %v598 = vld [vmem:[%s570 + $0x34] sm:$0xf]
                %599 = vst [vmem:[%s571 + $0x34] sm:$0xf] %v598
                %v600 = vld [vmem:[%s570 + $0x38] sm:$0xf]
                %601 = vst [vmem:[%s571 + $0x38] sm:$0xf] %v600
                %v602 = vld [vmem:[%s570 + $0x3c] sm:$0xf]
                %603 = vst [vmem:[%s571 + $0x3c] sm:$0xf] %v602
                %s604 = sadd.s32 1, %s569
                %p605 = scmp.ge.s32.totalorder %s604, %s562
                %s606 = scalar_select %p605, 0, %s604
                %s607 = smul.u32 %s606, 64
                %s608 = smul.u32 %s606, 64
                %s609 = scalar_lea.vmem %s542, %s607 [#allocation2]
                %s610 = scalar_lea.vmem %s553, %s608
              $region53: #{dqn_forward.4} parent=47 // loop_footer
                %s566 = sadd.s32 %s564, 1
              $region54: #{dqn_forward.4} parent=47 // loop_footer_branch
                %563 = sbr.rel target = $region50
              $region55: #{dqn_forward.4} parent=47 // loop_exit
                _
              %s611 = sshrl.u32 %s549, 4
              %s612 = sand.u32 %s549, 15
              %s613 = smul.u32 %s611, 16
              %s614 = smul.u32 4, %s613
              %s615 = scalar_lea.vmem %s542, %s614 [#allocation2]
              %s616 = smul.u32 4, %s613
              %s617 = scalar_lea.vmem %s553, %s616
              // While loop
              $region56: #{dqn_forward.4} parent=47 // loop_pre_header
                _
              $region57: #{dqn_forward.4} parent=47 // loop_header
                %s619 = sphi 0, %s621
                %p620 = scmp.ge.s32.totalorder %s619, %s612
                %s624 = sphi 0, %s631
                %s625 = sphi %s615, %s634
                %s626 = sphi %s617, %s635
              $region58: #{dqn_forward.4} parent=47 // loop_header_branch
                %623 = sbr.rel (%p620) target = $region62
              $region59: #{dqn_forward.4} parent=47 // loop_body
                %v627 = vld [vmem:[%s625] sm:$0xf]
                %628 = vst [vmem:[%s626] sm:$0xf] %v627
                %s629 = sadd.s32 1, %s624
                %p630 = scmp.ge.s32.totalorder %s629, %s612
                %s631 = scalar_select %p630, 0, %s629
                %s632 = smul.u32 %s631, 4
                %s633 = smul.u32 %s631, 4
                %s634 = scalar_lea.vmem %s615, %s632 [#allocation2]
                %s635 = scalar_lea.vmem %s617, %s633
              $region60: #{dqn_forward.4} parent=47 // loop_footer
                %s621 = sadd.s32 %s619, 1
              $region61: #{dqn_forward.4} parent=47 // loop_footer_branch
                %618 = sbr.rel target = $region57
              $region62: #{dqn_forward.4} parent=47 // loop_exit
                _
            $region48: #{dqn_forward.4} parent=39 // pred_fallthru
              _
          $region40: #{dqn_forward.4} parent=35 // pred_fallthru
            _
          %713 = vnop
        $region36: #{dqn_forward.4} parent=31 // pred_fallthru
          _
      $region32: #{dqn_forward.4} parent=5 // pred_fallthru
        _
      %p714 = scmp.le.s32.totalorder 2, %s9
      // Predicated region
      $region81: #{dqn_forward.4} parent=5 // pred_check
        %p715 = pneg %p714
      $region82: #{dqn_forward.4} parent=5 // pred_check_branch
        %717 = sbr.rel (%p715) target = $region84
      $region83: #{dqn_forward.4} parent=5 // pred_region
        %s718 = ssub.s32 %s9, 2
        // Predicated region
        $region85: #{dqn_forward.4} parent=83 // pred_check
          %p719 = pneg %p106
        $region86: #{dqn_forward.4} parent=83 // pred_check_branch
          %721 = sbr.rel (%p719) target = $region88
        $region87: #{dqn_forward.4} parent=83 // pred_region
          %s722 = sand.u32 %s91, 1
          %s723 = sand.u32 %s91, 1
          %s724 = smul.addr %s723, 64
          %s725 = scalar_lea.vmem [#allocation2], %s724
        $region88: #{dqn_forward.4} parent=83 // pred_fallthru
          _
      $region84: #{dqn_forward.4} parent=5 // pred_fallthru
        _
    $region6: #{dqn_forward.4} parent=1 // loop_footer
      %s13 = sadd.s32 1, %s9
    $region7: #{dqn_forward.4} parent=1 // loop_footer_branch
      %8 = sbr.rel target = $region3
    $region8: #{dqn_forward.4} parent=1 // loop_exit
      _

// kernel: dqn_forward.5
$region0: #{dqn_forward.5}
  #allocation0 [shape = 'u32[]', space=smem, size = 0x4, offset = 0x4, fixed_abs, tag = 'smem constant byte address 0x4 - core index']
  #allocation1 [shape = 'u32[144,128]{1,0:T(1,128)}', space=vmem, size = 0x12000, scoped, tag = 'internal scratch']
  %s0 = inlined_call_operand.vmem [shape: bf16[18,512], index: 0, kind: input, shape index: {}]
  %s1 = inlined_call_operand.vmem [shape: bf16[512,64], index: 1, kind: input, shape index: {}]
  %s2 = inlined_call_operand.vmem [shape: f32[1,64], index: 2, kind: input, shape index: {}]
  %s3 = inlined_call_operand.vmem [shape: bf16[18,64], index: 3, kind: output, shape index: {}]
  %s4 = sld [smem:[#allocation0]]
  $region22: #{dqn_forward.5} parent=0
    _
  %s6 = ssub.s32 1, %s4
  %s7 = scalar_select 0, %s6, %s4
  // Predicated region
  $region2: #{dqn_forward.5} parent=0 // pred_check
    _
  $region3: #{dqn_forward.5} parent=0 // pred_check_branch
    %9 = sbr.rel (0) target = $region5
  $region4: #{dqn_forward.5} parent=0 // pred_region
    _
  $region5: #{dqn_forward.5} parent=0 // pred_fallthru
    _
  // Predicated region
  $region6: #{dqn_forward.5} parent=0 // pred_check
    _
  $region7: #{dqn_forward.5} parent=0 // pred_check_branch
    %11 = sbr.rel (0) target = $region9
  $region8: #{dqn_forward.5} parent=0 // pred_region
    _
  $region9: #{dqn_forward.5} parent=0 // pred_fallthru
    _
  // Predicated region
  $region10: #{dqn_forward.5} parent=0 // pred_check
    _
  $region11: #{dqn_forward.5} parent=0 // pred_check_branch
    %13 = sbr.rel (0) target = $region13
  $region12: #{dqn_forward.5} parent=0 // pred_region
    _
  $region13: #{dqn_forward.5} parent=0 // pred_fallthru
    _
  %v15 = vld [vmem:[%s0] sm:$0xff]
  %v16 = vld [vmem:[%s0 + $0x8] sm:$0xff]
  %v17 = vld [vmem:[%s0 + $0x10] sm:$0xff]
  %v18 = vld [vmem:[%s0 + $0x18] sm:$0xff]
  %v19 = vld [vmem:[%s0 + $0x20] sm:$0x11]
  %v20 = vld [vmem:[%s0 + $0x28] sm:$0x11]
  %v21 = vld [vmem:[%s1] sm:$0xf]
  %v22 = vld [vmem:[%s1 + $0x4] sm:$0xf]
  %v23 = vld [vmem:[%s1 + $0x8] sm:$0xf]
  %v24 = vld [vmem:[%s1 + $0xc] sm:$0xf]
  %v25 = vld [vmem:[%s1 + $0x10] sm:$0xf]
  %v26 = vld [vmem:[%s1 + $0x14] sm:$0xf]
  %v27 = vld [vmem:[%s1 + $0x18] sm:$0xf]
  %v28 = vld [vmem:[%s1 + $0x1c] sm:$0xf]
  %v29 = vld [vmem:[%s1 + $0x20] sm:$0xf]
  %v30 = vld [vmem:[%s1 + $0x24] sm:$0xf]
  %v31 = vld [vmem:[%s1 + $0x28] sm:$0xf]
  %v32 = vld [vmem:[%s1 + $0x2c] sm:$0xf]
  %v33 = vld [vmem:[%s1 + $0x30] sm:$0xf]
  %v34 = vld [vmem:[%s1 + $0x34] sm:$0xf]
  %v35 = vld [vmem:[%s1 + $0x38] sm:$0xf]
  %v36 = vld [vmem:[%s1 + $0x3c] sm:$0xf]
  %v37 = vld [vmem:[%s1 + $0x40] sm:$0xf]
  %v38 = vld [vmem:[%s1 + $0x44] sm:$0xf]
  %v39 = vld [vmem:[%s1 + $0x48] sm:$0xf]
  %v40 = vld [vmem:[%s1 + $0x4c] sm:$0xf]
  %v41 = vld [vmem:[%s1 + $0x50] sm:$0xf]
  %v42 = vld [vmem:[%s1 + $0x54] sm:$0xf]
  %v43 = vld [vmem:[%s1 + $0x58] sm:$0xf]
  %v44 = vld [vmem:[%s1 + $0x5c] sm:$0xf]
  %v45 = vld [vmem:[%s1 + $0x60] sm:$0xf]
  %v46 = vld [vmem:[%s1 + $0x64] sm:$0xf]
  %v47 = vld [vmem:[%s1 + $0x68] sm:$0xf]
  %v48 = vld [vmem:[%s1 + $0x6c] sm:$0xf]
  %v49 = vld [vmem:[%s1 + $0x70] sm:$0xf]
  %v50 = vld [vmem:[%s1 + $0x74] sm:$0xf]
  %v51 = vld [vmem:[%s1 + $0x78] sm:$0xf]
  %v52 = vld [vmem:[%s1 + $0x7c] sm:$0xf]
  %v53 = vld [vmem:[%s1 + $0x80] sm:$0xf]
  %v54 = vld [vmem:[%s1 + $0x84] sm:$0xf]
  %v55 = vld [vmem:[%s1 + $0x88] sm:$0xf]
  %v56 = vld [vmem:[%s1 + $0x8c] sm:$0xf]
  %v57 = vld [vmem:[%s1 + $0x90] sm:$0xf]
  %v58 = vld [vmem:[%s1 + $0x94] sm:$0xf]
  %v59 = vld [vmem:[%s1 + $0x98] sm:$0xf]
  %v60 = vld [vmem:[%s1 + $0x9c] sm:$0xf]
  %v61 = vld [vmem:[%s1 + $0xa0] sm:$0xf]
  %v62 = vld [vmem:[%s1 + $0xa4] sm:$0xf]
  %v63 = vld [vmem:[%s1 + $0xa8] sm:$0xf]
  %v64 = vld [vmem:[%s1 + $0xac] sm:$0xf]
  %v65 = vld [vmem:[%s1 + $0xb0] sm:$0xf]
  %v66 = vld [vmem:[%s1 + $0xb4] sm:$0xf]
  %v67 = vld [vmem:[%s1 + $0xb8] sm:$0xf]
  %v68 = vld [vmem:[%s1 + $0xbc] sm:$0xf]
  %v69 = vld [vmem:[%s1 + $0xc0] sm:$0xf]
  %v70 = vld [vmem:[%s1 + $0xc4] sm:$0xf]
  %v71 = vld [vmem:[%s1 + $0xc8] sm:$0xf]
  %v72 = vld [vmem:[%s1 + $0xcc] sm:$0xf]
  %v73 = vld [vmem:[%s1 + $0xd0] sm:$0xf]
  %v74 = vld [vmem:[%s1 + $0xd4] sm:$0xf]
  %v75 = vld [vmem:[%s1 + $0xd8] sm:$0xf]
  %v76 = vld [vmem:[%s1 + $0xdc] sm:$0xf]
  %v77 = vld [vmem:[%s1 + $0xe0] sm:$0xf]
  %v78 = vld [vmem:[%s1 + $0xe4] sm:$0xf]
  %v79 = vld [vmem:[%s1 + $0xe8] sm:$0xf]
  %v80 = vld [vmem:[%s1 + $0xec] sm:$0xf]
  %v81 = vld [vmem:[%s1 + $0xf0] sm:$0xf]
  %v82 = vld [vmem:[%s1 + $0xf4] sm:$0xf]
  %v83 = vld [vmem:[%s1 + $0xf8] sm:$0xf]
  %v84 = vld [vmem:[%s1 + $0xfc] sm:$0xf]
  %v85 = vld [vmem:[%s2] sm:$0x1]
  %v87 = vlaneseq
  %v88 = vshrl.u32 %v87, 7
  %v89 = vsub.s32 0, %v88
  %v90 = vrot.slane %v85, %v89
  %v98 = vunpack.c.l.b16 %v15
  %v99 = vunpack.c.h.b16 %v15
  %v100 = vunpack.c.l.b16 %v16
  %v101 = vunpack.c.h.b16 %v16
  %v102 = vunpack.c.l.b16 %v17
  %v103 = vunpack.c.h.b16 %v17
  %v104 = vunpack.c.l.b16 %v18
  %v105 = vunpack.c.h.b16 %v18
  %v106 = vunpack.c.l.b16 %v19
  %v107 = vunpack.c.h.b16 %v19
  %v108 = vunpack.c.l.b16 %v20
  %v109 = vunpack.c.h.b16 %v20
  %v110 = vpack.c.b16 %v102, %v98
  %v111 = vpack.c.b16 %v103, %v99
  %v112 = vpack.c.b16 %v104, %v100
  %v113 = vpack.c.b16 %v105, %v101
  %v114 = vpack.c.b16 %v106, %v106
  %v115 = vpack.c.b16 %v107, %v107
  %v116 = vpack.c.b16 %v108, %v108
  %v117 = vpack.c.b16 %v109, %v109
  %v190 = vunpack.c.l.b16 %v21
  %v191 = vunpack.c.l.b16 %v22
  %v192 = vunpack.c.l.b16 %v23
  %v193 = vunpack.c.l.b16 %v24
  %v194 = vunpack.c.l.b16 %v25
  %v195 = vunpack.c.l.b16 %v26
  %v196 = vunpack.c.l.b16 %v27
  %v197 = vunpack.c.l.b16 %v28
  %v198 = vunpack.c.l.b16 %v29
  %v199 = vunpack.c.l.b16 %v30
  %v200 = vunpack.c.l.b16 %v31
  %v201 = vunpack.c.l.b16 %v32
  %v202 = vunpack.c.l.b16 %v33
  %v203 = vunpack.c.l.b16 %v34
  %v204 = vunpack.c.l.b16 %v35
  %v205 = vunpack.c.l.b16 %v36
  %v206 = vunpack.c.l.b16 %v37
  %v207 = vunpack.c.l.b16 %v38
  %v208 = vunpack.c.l.b16 %v39
  %v209 = vunpack.c.l.b16 %v40
  %v210 = vunpack.c.l.b16 %v41
  %v211 = vunpack.c.l.b16 %v42
  %v212 = vunpack.c.l.b16 %v43
  %v213 = vunpack.c.l.b16 %v44
  %v214 = vunpack.c.l.b16 %v45
  %v215 = vunpack.c.l.b16 %v46
  %v216 = vunpack.c.l.b16 %v47
  %v217 = vunpack.c.l.b16 %v48
  %v218 = vunpack.c.l.b16 %v49
  %v219 = vunpack.c.l.b16 %v50
  %v220 = vunpack.c.l.b16 %v51
  %v221 = vunpack.c.l.b16 %v52
  %v222 = vunpack.c.l.b16 %v53
  %v223 = vunpack.c.l.b16 %v54
  %v224 = vunpack.c.l.b16 %v55
  %v225 = vunpack.c.l.b16 %v56
  %v226 = vunpack.c.l.b16 %v57
  %v227 = vunpack.c.l.b16 %v58
  %v228 = vunpack.c.l.b16 %v59
  %v229 = vunpack.c.l.b16 %v60
  %v230 = vunpack.c.l.b16 %v61
  %v231 = vunpack.c.l.b16 %v62
  %v232 = vunpack.c.l.b16 %v63
  %v233 = vunpack.c.l.b16 %v64
  %v234 = vunpack.c.l.b16 %v65
  %v235 = vunpack.c.l.b16 %v66
  %v236 = vunpack.c.l.b16 %v67
  %v237 = vunpack.c.l.b16 %v68
  %v238 = vunpack.c.l.b16 %v69
  %v239 = vunpack.c.l.b16 %v70
  %v240 = vunpack.c.l.b16 %v71
  %v241 = vunpack.c.l.b16 %v72
  %v242 = vunpack.c.l.b16 %v73
  %v243 = vunpack.c.l.b16 %v74
  %v244 = vunpack.c.l.b16 %v75
  %v245 = vunpack.c.l.b16 %v76
  %v246 = vunpack.c.l.b16 %v77
  %v247 = vunpack.c.l.b16 %v78
  %v248 = vunpack.c.l.b16 %v79
  %v249 = vunpack.c.l.b16 %v80
  %v250 = vunpack.c.l.b16 %v81
  %v251 = vunpack.c.l.b16 %v82
  %v252 = vunpack.c.l.b16 %v83
  %v253 = vunpack.c.l.b16 %v84
  %v254 = vpack.c.b16 %v191, %v190
  %v255 = vpack.c.b16 %v193, %v192
  %v256 = vpack.c.b16 %v195, %v194
  %v257 = vpack.c.b16 %v197, %v196
  %v258 = vpack.c.b16 %v199, %v198
  %v259 = vpack.c.b16 %v201, %v200
  %v260 = vpack.c.b16 %v203, %v202
  %v261 = vpack.c.b16 %v205, %v204
  %v262 = vpack.c.b16 %v207, %v206
  %v263 = vpack.c.b16 %v209, %v208
  %v264 = vpack.c.b16 %v211, %v210
  %v265 = vpack.c.b16 %v213, %v212
  %v266 = vpack.c.b16 %v215, %v214
  %v267 = vpack.c.b16 %v217, %v216
  %v268 = vpack.c.b16 %v219, %v218
  %v269 = vpack.c.b16 %v221, %v220
  %v270 = vpack.c.b16 %v223, %v222
  %v271 = vpack.c.b16 %v225, %v224
  %v272 = vpack.c.b16 %v227, %v226
  %v273 = vpack.c.b16 %v229, %v228
  %v274 = vpack.c.b16 %v231, %v230
  %v275 = vpack.c.b16 %v233, %v232
  %v276 = vpack.c.b16 %v235, %v234
  %v277 = vpack.c.b16 %v237, %v236
  %v278 = vpack.c.b16 %v239, %v238
  %v279 = vpack.c.b16 %v241, %v240
  %v280 = vpack.c.b16 %v243, %v242
  %v281 = vpack.c.b16 %v245, %v244
  %v282 = vpack.c.b16 %v247, %v246
  %v283 = vpack.c.b16 %v249, %v248
  %v284 = vpack.c.b16 %v251, %v250
  %v285 = vpack.c.b16 %v253, %v252
  %318 = vmatprep.subr.bf16.mxu0 0
  %319 = vmatpush1.bf16.msra.mxu0 %v254
  %320 = vmatprep.subr.bf16.mxu0 0
  %321 = vmatpush1.bf16.msra.mxu0 %v255
  %322 = vmatprep.subr.bf16.mxu0 0
  %323 = vmatpush1.bf16.msra.mxu0 %v256
  %324 = vmatprep.subr.bf16.mxu0 0
  %325 = vmatpush1.bf16.msra.mxu0 %v257
  %326 = vmatprep.subr.bf16.mxu0 0
  %327 = vmatpush1.bf16.msra.mxu0 %v258
  %328 = vmatprep.subr.bf16.mxu0 0
  %329 = vmatpush1.bf16.msra.mxu0 %v259
  %330 = vmatprep.subr.bf16.mxu0 0
  %331 = vmatpush1.bf16.msra.mxu0 %v260
  %332 = vmatprep.subr.bf16.mxu0 0
  %333 = vmatpush1.bf16.msra.mxu0 %v261
  %334 = vmatprep.subr.bf16.mxu0 0
  %335 = vmatpush1.bf16.msra.mxu0 %v262
  %336 = vmatprep.subr.bf16.mxu0 0
  %337 = vmatpush1.bf16.msra.mxu0 %v263
  %338 = vmatprep.subr.bf16.mxu0 0
  %339 = vmatpush1.bf16.msra.mxu0 %v264
  %340 = vmatprep.subr.bf16.mxu0 0
  %341 = vmatpush1.bf16.msra.mxu0 %v265
  %342 = vmatprep.subr.bf16.mxu0 0
  %343 = vmatpush1.bf16.msra.mxu0 %v266
  %344 = vmatprep.subr.bf16.mxu0 0
  %345 = vmatpush1.bf16.msra.mxu0 %v267
  %346 = vmatprep.subr.bf16.mxu0 0
  %347 = vmatpush1.bf16.msra.mxu0 %v268
  %348 = vmatprep.subr.bf16.mxu0 0
  %349 = vmatpush1.bf16.msra.mxu0 %v269
  %350 = vmatprep.mubr.bf16.mxu0 %v111
  %351 = vmatmul.mubr.bf16.gmra.mrb[0].mxu0 %v110
  %v352 = vpop.f32.mrb[0].mxu0
  %v353 = vadd.f32 %v90, %v352
  %v354 = vpop.f32.mrb[0].mxu0
  %v355 = vpop.f32.mrb[0].mxu0
  %v356 = vadd.f32 %v90, %v355
  %v357 = vpop.f32.mrb[0].mxu0
  %358 = vmatprep.mubr.bf16.mxu0 %v115
  %359 = vmatmul.mubr.bf16.gmra.mrb[0].mxu0 %v114
  %v360 = vpop.f32.mrb[0].mxu0
  %v361 = vadd.f32 %v90, %v360
  %v362 = vpop.f32.mrb[0].mxu0
  %v363 = vpop.f32.mrb[0].mxu0
  %v364 = vpop.f32.mrb[0].mxu0
  %365 = vdwg.mxu0
  %366 = vmatprep.subr.bf16.mxu0 0
  %367 = vmatpush1.bf16.msra.mxu0 %v270
  %368 = vmatprep.subr.bf16.mxu0 0
  %369 = vmatpush1.bf16.msra.mxu0 %v271
  %370 = vmatprep.subr.bf16.mxu0 0
  %371 = vmatpush1.bf16.msra.mxu0 %v272
  %372 = vmatprep.subr.bf16.mxu0 0
  %373 = vmatpush1.bf16.msra.mxu0 %v273
  %374 = vmatprep.subr.bf16.mxu0 0
  %375 = vmatpush1.bf16.msra.mxu0 %v274
  %376 = vmatprep.subr.bf16.mxu0 0
  %377 = vmatpush1.bf16.msra.mxu0 %v275
  %378 = vmatprep.subr.bf16.mxu0 0
  %379 = vmatpush1.bf16.msra.mxu0 %v276
  %380 = vmatprep.subr.bf16.mxu0 0
  %381 = vmatpush1.bf16.msra.mxu0 %v277
  %382 = vmatprep.subr.bf16.mxu0 0
  %383 = vmatpush1.bf16.msra.mxu0 %v278
  %384 = vmatprep.subr.bf16.mxu0 0
  %385 = vmatpush1.bf16.msra.mxu0 %v279
  %386 = vmatprep.subr.bf16.mxu0 0
  %387 = vmatpush1.bf16.msra.mxu0 %v280
  %388 = vmatprep.subr.bf16.mxu0 0
  %389 = vmatpush1.bf16.msra.mxu0 %v281
  %390 = vmatprep.subr.bf16.mxu0 0
  %391 = vmatpush1.bf16.msra.mxu0 %v282
  %392 = vmatprep.subr.bf16.mxu0 0
  %393 = vmatpush1.bf16.msra.mxu0 %v283
  %394 = vmatprep.subr.bf16.mxu0 0
  %395 = vmatpush1.bf16.msra.mxu0 %v284
  %396 = vmatprep.subr.bf16.mxu0 0
  %397 = vmatpush1.bf16.msra.mxu0 %v285
  %398 = vmatprep.mubr.bf16.mxu0 %v113
  %399 = vmatmul.mubr.bf16.gmra.mrb[0].mxu0 %v112
  %v400 = vpop.f32.mrb[0].mxu0
  %v401 = vadd.f32 %v353, %v400
  %v402 = vpop.f32.mrb[0].mxu0
  %v403 = vpop.f32.mrb[0].mxu0
  %v404 = vadd.f32 %v356, %v403
  %v405 = vpop.f32.mrb[0].mxu0
  %406 = vmatprep.mubr.bf16.mxu0 %v117
  %407 = vmatmul.mubr.bf16.gmra.mrb[0].mxu0 %v116
  %v408 = vpop.f32.mrb[0].mxu0
  %v409 = vadd.f32 %v361, %v408
  %v410 = vpop.f32.mrb[0].mxu0
  %v411 = vpop.f32.mrb[0].mxu0
  %v412 = vpop.f32.mrb[0].mxu0
  %413 = vdwg.mxu0
  %vm414 = vcmp.gt.f32.partialorder %v401, 0.0
  %vm415 = vcmp.gt.f32.partialorder %v404, 0.0
  %vm416 = vcmp.gt.f32.partialorder %v409, 0.0
  %v417 = vmul.f32 %v401, 0.01
  %v418 = vmul.f32 %v404, 0.01
  %v419 = vmul.f32 %v409, 0.01
  %v420 = vsel %vm414, %v401, %v417
  %v421 = vsel %vm415, %v404, %v418
  %v422 = vsel %vm416, %v409, %v419
  %v423 = vpack.c.bf16 %v421, %v420
  %v424 = vpack.c.bf16 %v422, %v422
  %v427 = vunpack.c.l.b16 %v423
  %v428 = vunpack.c.h.b16 %v423
  %v429 = vunpack.c.l.b16 %v424
  %v430 = vpack.c.b16 %v427, %v427
  %v431 = vpack.c.b16 %v428, %v428
  %v432 = vpack.c.b16 %v429, %v429
  %vm436 = vcmask 519168
  %437 = vst.msk [vmem:[%s3] sm:$0xf] %vm436, %v430
  %438 = vst.msk [vmem:[%s3 + $0x4] sm:$0xf] %vm436, %v431
  %vm439 = vcmask 516096
  %440 = vst.msk [vmem:[%s3 + $0x8] sm:$0x1] %vm439, %v432
  // Predicated region
  $region14: #{dqn_forward.5} parent=0 // pred_check
    _
  $region15: #{dqn_forward.5} parent=0 // pred_check_branch
    %442 = sbr.rel (0) target = $region17
  $region16: #{dqn_forward.5} parent=0 // pred_region
    _
  $region17: #{dqn_forward.5} parent=0 // pred_fallthru
    _
  // Predicated region
  $region18: #{dqn_forward.5} parent=0 // pred_check
    _
  $region19: #{dqn_forward.5} parent=0 // pred_check_branch
    %444 = sbr.rel (0) target = $region21
  $region20: #{dqn_forward.5} parent=0 // pred_region
    _
  $region21: #{dqn_forward.5} parent=0 // pred_fallthru
    _

// kernel: dqn_forward.6
$region0: #{dqn_forward.6}
  #allocation0 [shape = 'u32[]', space=smem, size = 0x4, offset = 0x4, fixed_abs, tag = 'smem constant byte address 0x4 - core index']
  #allocation1 [shape = 'u32[144,128]{1,0:T(1,128)}', space=vmem, size = 0x12000, scoped, tag = 'internal scratch']
  %s0 = inlined_call_operand.vmem [shape: bf16[2,576], index: 0, kind: input, shape index: {}]
  %s1 = inlined_call_operand.vmem [shape: bf16[576,64], index: 1, kind: input, shape index: {}]
  %s2 = inlined_call_operand.vmem [shape: f32[1,64], index: 2, kind: input, shape index: {}]
  %s3 = inlined_call_operand.vmem [shape: bf16[2,64], index: 3, kind: output, shape index: {}]
  %s4 = sld [smem:[#allocation0]]
  $region22: #{dqn_forward.6} parent=0
    _
  %s6 = ssub.s32 1, %s4
  %s7 = scalar_select 0, %s6, %s4
  // Predicated region
  $region2: #{dqn_forward.6} parent=0 // pred_check
    _
  $region3: #{dqn_forward.6} parent=0 // pred_check_branch
    %9 = sbr.rel (0) target = $region5
  $region4: #{dqn_forward.6} parent=0 // pred_region
    _
  $region5: #{dqn_forward.6} parent=0 // pred_fallthru
    _
  // Predicated region
  $region6: #{dqn_forward.6} parent=0 // pred_check
    _
  $region7: #{dqn_forward.6} parent=0 // pred_check_branch
    %11 = sbr.rel (0) target = $region9
  $region8: #{dqn_forward.6} parent=0 // pred_region
    _
  $region9: #{dqn_forward.6} parent=0 // pred_fallthru
    _
  // Predicated region
  $region10: #{dqn_forward.6} parent=0 // pred_check
    _
  $region11: #{dqn_forward.6} parent=0 // pred_check_branch
    %13 = sbr.rel (0) target = $region13
  $region12: #{dqn_forward.6} parent=0 // pred_region
    _
  $region13: #{dqn_forward.6} parent=0 // pred_fallthru
    _
  %v15 = vld [vmem:[%s0] sm:$0x1f]
  %v16 = vld [vmem:[%s1] sm:$0xf]
  %v17 = vld [vmem:[%s1 + $0x4] sm:$0xf]
  %v18 = vld [vmem:[%s1 + $0x8] sm:$0xf]
  %v19 = vld [vmem:[%s1 + $0xc] sm:$0xf]
  %v20 = vld [vmem:[%s1 + $0x10] sm:$0xf]
  %v21 = vld [vmem:[%s1 + $0x14] sm:$0xf]
  %v22 = vld [vmem:[%s1 + $0x18] sm:$0xf]
  %v23 = vld [vmem:[%s1 + $0x1c] sm:$0xf]
  %v24 = vld [vmem:[%s1 + $0x20] sm:$0xf]
  %v25 = vld [vmem:[%s1 + $0x24] sm:$0xf]
  %v26 = vld [vmem:[%s1 + $0x28] sm:$0xf]
  %v27 = vld [vmem:[%s1 + $0x2c] sm:$0xf]
  %v28 = vld [vmem:[%s1 + $0x30] sm:$0xf]
  %v29 = vld [vmem:[%s1 + $0x34] sm:$0xf]
  %v30 = vld [vmem:[%s1 + $0x38] sm:$0xf]
  %v31 = vld [vmem:[%s1 + $0x3c] sm:$0xf]
  %v32 = vld [vmem:[%s1 + $0x40] sm:$0xf]
  %v33 = vld [vmem:[%s1 + $0x44] sm:$0xf]
  %v34 = vld [vmem:[%s1 + $0x48] sm:$0xf]
  %v35 = vld [vmem:[%s1 + $0x4c] sm:$0xf]
  %v36 = vld [vmem:[%s1 + $0x50] sm:$0xf]
  %v37 = vld [vmem:[%s1 + $0x54] sm:$0xf]
  %v38 = vld [vmem:[%s1 + $0x58] sm:$0xf]
  %v39 = vld [vmem:[%s1 + $0x5c] sm:$0xf]
  %v40 = vld [vmem:[%s1 + $0x60] sm:$0xf]
  %v41 = vld [vmem:[%s1 + $0x64] sm:$0xf]
  %v42 = vld [vmem:[%s1 + $0x68] sm:$0xf]
  %v43 = vld [vmem:[%s1 + $0x6c] sm:$0xf]
  %v44 = vld [vmem:[%s1 + $0x70] sm:$0xf]
  %v45 = vld [vmem:[%s1 + $0x74] sm:$0xf]
  %v46 = vld [vmem:[%s1 + $0x78] sm:$0xf]
  %v47 = vld [vmem:[%s1 + $0x7c] sm:$0xf]
  %v48 = vld [vmem:[%s1 + $0x80] sm:$0xf]
  %v49 = vld [vmem:[%s1 + $0x84] sm:$0xf]
  %v50 = vld [vmem:[%s1 + $0x88] sm:$0xf]
  %v51 = vld [vmem:[%s1 + $0x8c] sm:$0xf]
  %v52 = vld [vmem:[%s1 + $0x90] sm:$0xf]
  %v53 = vld [vmem:[%s1 + $0x94] sm:$0xf]
  %v54 = vld [vmem:[%s1 + $0x98] sm:$0xf]
  %v55 = vld [vmem:[%s1 + $0x9c] sm:$0xf]
  %v56 = vld [vmem:[%s1 + $0xa0] sm:$0xf]
  %v57 = vld [vmem:[%s1 + $0xa4] sm:$0xf]
  %v58 = vld [vmem:[%s1 + $0xa8] sm:$0xf]
  %v59 = vld [vmem:[%s1 + $0xac] sm:$0xf]
  %v60 = vld [vmem:[%s1 + $0xb0] sm:$0xf]
  %v61 = vld [vmem:[%s1 + $0xb4] sm:$0xf]
  %v62 = vld [vmem:[%s1 + $0xb8] sm:$0xf]
  %v63 = vld [vmem:[%s1 + $0xbc] sm:$0xf]
  %v64 = vld [vmem:[%s1 + $0xc0] sm:$0xf]
  %v65 = vld [vmem:[%s1 + $0xc4] sm:$0xf]
  %v66 = vld [vmem:[%s1 + $0xc8] sm:$0xf]
  %v67 = vld [vmem:[%s1 + $0xcc] sm:$0xf]
  %v68 = vld [vmem:[%s1 + $0xd0] sm:$0xf]
  %v69 = vld [vmem:[%s1 + $0xd4] sm:$0xf]
  %v70 = vld [vmem:[%s1 + $0xd8] sm:$0xf]
  %v71 = vld [vmem:[%s1 + $0xdc] sm:$0xf]
  %v72 = vld [vmem:[%s1 + $0xe0] sm:$0xf]
  %v73 = vld [vmem:[%s1 + $0xe4] sm:$0xf]
  %v74 = vld [vmem:[%s1 + $0xe8] sm:$0xf]
  %v75 = vld [vmem:[%s1 + $0xec] sm:$0xf]
  %v76 = vld [vmem:[%s1 + $0xf0] sm:$0xf]
  %v77 = vld [vmem:[%s1 + $0xf4] sm:$0xf]
  %v78 = vld [vmem:[%s1 + $0xf8] sm:$0xf]
  %v79 = vld [vmem:[%s1 + $0xfc] sm:$0xf]
  %v80 = vld [vmem:[%s1 + $0x100] sm:$0xf]
  %v81 = vld [vmem:[%s1 + $0x104] sm:$0xf]
  %v82 = vld [vmem:[%s1 + $0x108] sm:$0xf]
  %v83 = vld [vmem:[%s1 + $0x10c] sm:$0xf]
  %v84 = vld [vmem:[%s1 + $0x110] sm:$0xf]
  %v85 = vld [vmem:[%s1 + $0x114] sm:$0xf]
  %v86 = vld [vmem:[%s1 + $0x118] sm:$0xf]
  %v87 = vld [vmem:[%s1 + $0x11c] sm:$0xf]
  %v88 = vld [vmem:[%s2] sm:$0x1]
  %v90 = vlaneseq
  %v91 = vshrl.u32 %v90, 7
  %v92 = vsub.s32 0, %v91
  %v93 = vrot.slane %v88, %v92
  %v96 = vcombine.high %v15, %v15
  %v98 = vunpack.c.l.s4 1966171168
  %v99 = vunpack.c.0.s8 %v98
  %v100 = vlaneseq
  %v101 = vshrl.u32 %v100, 7
  %v102 = vsub.s32 %v99, %v101
  %v103 = vrot.slane %v15, %v102
  %v105 = vunpack.c.l.s4 1966171168
  %v106 = vunpack.c.0.s8 %v105
  %v107 = vlaneseq
  %v108 = vshrl.u32 %v107, 7
  %v109 = vsub.s32 %v106, %v108
  %v110 = vrot.slane %v96, %v109
  %v111 = vcombine.high %v103, %v103
  %v113 = vunpack.c.l.s4 1966171168
  %v114 = vunpack.c.0.s8 %v113
  %v115 = vlaneseq
  %v116 = vshrl.u32 %v115, 7
  %v117 = vsub.s32 %v114, %v116
  %v118 = vrot.slane %v103, %v117
  %v120 = vunpack.c.l.s4 1966171168
  %v121 = vunpack.c.0.s8 %v120
  %v122 = vlaneseq
  %v123 = vshrl.u32 %v122, 7
  %v124 = vsub.s32 %v121, %v123
  %v125 = vrot.slane %v110, %v124
  %v127 = vunpack.c.l.s4 1966171168
  %v128 = vunpack.c.0.s8 %v127
  %v129 = vlaneseq
  %v130 = vshrl.u32 %v129, 7
  %v131 = vsub.s32 %v128, %v130
  %v132 = vrot.slane %v111, %v131
  %v133 = vcombine.high %v118, %v118
  %v134 = vcombine.high %v132, %v132
  %v211 = vunpack.c.l.b16 %v16
  %v212 = vunpack.c.l.b16 %v17
  %v213 = vunpack.c.l.b16 %v18
  %v214 = vunpack.c.l.b16 %v19
  %v215 = vunpack.c.l.b16 %v20
  %v216 = vunpack.c.l.b16 %v21
  %v217 = vunpack.c.l.b16 %v22
  %v218 = vunpack.c.l.b16 %v23
  %v219 = vunpack.c.l.b16 %v24
  %v220 = vunpack.c.l.b16 %v25
  %v221 = vunpack.c.l.b16 %v26
  %v222 = vunpack.c.l.b16 %v27
  %v223 = vunpack.c.l.b16 %v28
  %v224 = vunpack.c.l.b16 %v29
  %v225 = vunpack.c.l.b16 %v30
  %v226 = vunpack.c.l.b16 %v31
  %v227 = vunpack.c.l.b16 %v32
  %v228 = vunpack.c.l.b16 %v33
  %v229 = vunpack.c.l.b16 %v34
  %v230 = vunpack.c.l.b16 %v35
  %v231 = vunpack.c.l.b16 %v36
  %v232 = vunpack.c.l.b16 %v37
  %v233 = vunpack.c.l.b16 %v38
  %v234 = vunpack.c.l.b16 %v39
  %v235 = vunpack.c.l.b16 %v40
  %v236 = vunpack.c.l.b16 %v41
  %v237 = vunpack.c.l.b16 %v42
  %v238 = vunpack.c.l.b16 %v43
  %v239 = vunpack.c.l.b16 %v44
  %v240 = vunpack.c.l.b16 %v45
  %v241 = vunpack.c.l.b16 %v46
  %v242 = vunpack.c.l.b16 %v47
  %v243 = vunpack.c.l.b16 %v48
  %v244 = vunpack.c.l.b16 %v49
  %v245 = vunpack.c.l.b16 %v50
  %v246 = vunpack.c.l.b16 %v51
  %v247 = vunpack.c.l.b16 %v52
  %v248 = vunpack.c.l.b16 %v53
  %v249 = vunpack.c.l.b16 %v54
  %v250 = vunpack.c.l.b16 %v55
  %v251 = vunpack.c.l.b16 %v56
  %v252 = vunpack.c.l.b16 %v57
  %v253 = vunpack.c.l.b16 %v58
  %v254 = vunpack.c.l.b16 %v59
  %v255 = vunpack.c.l.b16 %v60
  %v256 = vunpack.c.l.b16 %v61
  %v257 = vunpack.c.l.b16 %v62
  %v258 = vunpack.c.l.b16 %v63
  %v259 = vunpack.c.l.b16 %v64
  %v260 = vunpack.c.l.b16 %v65
  %v261 = vunpack.c.l.b16 %v66
  %v262 = vunpack.c.l.b16 %v67
  %v263 = vunpack.c.l.b16 %v68
  %v264 = vunpack.c.l.b16 %v69
  %v265 = vunpack.c.l.b16 %v70
  %v266 = vunpack.c.l.b16 %v71
  %v267 = vunpack.c.l.b16 %v72
  %v268 = vunpack.c.l.b16 %v73
  %v269 = vunpack.c.l.b16 %v74
  %v270 = vunpack.c.l.b16 %v75
  %v271 = vunpack.c.l.b16 %v76
  %v272 = vunpack.c.l.b16 %v77
  %v273 = vunpack.c.l.b16 %v78
  %v274 = vunpack.c.l.b16 %v79
  %v275 = vunpack.c.l.b16 %v80
  %v276 = vunpack.c.l.b16 %v81
  %v277 = vunpack.c.l.b16 %v82
  %v278 = vunpack.c.l.b16 %v83
  %v279 = vunpack.c.l.b16 %v84
  %v280 = vunpack.c.l.b16 %v85
  %v281 = vunpack.c.l.b16 %v86
  %v282 = vunpack.c.l.b16 %v87
  %v283 = vpack.c.b16 %v212, %v211
  %v284 = vpack.c.b16 %v214, %v213
  %v285 = vpack.c.b16 %v216, %v215
  %v286 = vpack.c.b16 %v218, %v217
  %v287 = vpack.c.b16 %v220, %v219
  %v288 = vpack.c.b16 %v222, %v221
  %v289 = vpack.c.b16 %v224, %v223
  %v290 = vpack.c.b16 %v226, %v225
  %v291 = vpack.c.b16 %v228, %v227
  %v292 = vpack.c.b16 %v230, %v229
  %v293 = vpack.c.b16 %v232, %v231
  %v294 = vpack.c.b16 %v234, %v233
  %v295 = vpack.c.b16 %v236, %v235
  %v296 = vpack.c.b16 %v238, %v237
  %v297 = vpack.c.b16 %v240, %v239
  %v298 = vpack.c.b16 %v242, %v241
  %v299 = vpack.c.b16 %v244, %v243
  %v300 = vpack.c.b16 %v246, %v245
  %v301 = vpack.c.b16 %v248, %v247
  %v302 = vpack.c.b16 %v250, %v249
  %v303 = vpack.c.b16 %v252, %v251
  %v304 = vpack.c.b16 %v254, %v253
  %v305 = vpack.c.b16 %v256, %v255
  %v306 = vpack.c.b16 %v258, %v257
  %v307 = vpack.c.b16 %v260, %v259
  %v308 = vpack.c.b16 %v262, %v261
  %v309 = vpack.c.b16 %v264, %v263
  %v310 = vpack.c.b16 %v266, %v265
  %v311 = vpack.c.b16 %v268, %v267
  %v312 = vpack.c.b16 %v270, %v269
  %v313 = vpack.c.b16 %v272, %v271
  %v314 = vpack.c.b16 %v274, %v273
  %v315 = vpack.c.b16 %v276, %v275
  %v316 = vpack.c.b16 %v278, %v277
  %v317 = vpack.c.b16 %v280, %v279
  %v318 = vpack.c.b16 %v282, %v281
  %vm355 = vcmask 523264
  %v357 = vsel %vm355, %v125, 0
  %359 = vmatprep.subr.bf16.mxu0 0
  %360 = vmatpush1.bf16.msra.mxu0 %v283
  %361 = vmatprep.subr.bf16.mxu0 0
  %362 = vmatpush1.bf16.msra.mxu0 %v284
  %363 = vmatprep.subr.bf16.mxu0 0
  %364 = vmatpush1.bf16.msra.mxu0 %v285
  %365 = vmatprep.subr.bf16.mxu0 0
  %366 = vmatpush1.bf16.msra.mxu0 %v286
  %367 = vmatprep.subr.bf16.mxu0 0
  %368 = vmatpush1.bf16.msra.mxu0 %v287
  %369 = vmatprep.subr.bf16.mxu0 0
  %370 = vmatpush1.bf16.msra.mxu0 %v288
  %371 = vmatprep.subr.bf16.mxu0 0
  %372 = vmatpush1.bf16.msra.mxu0 %v289
  %373 = vmatprep.subr.bf16.mxu0 0
  %374 = vmatpush1.bf16.msra.mxu0 %v290
  %375 = vmatprep.subr.bf16.mxu0 0
  %376 = vmatpush1.bf16.msra.mxu0 %v291
  %377 = vmatprep.subr.bf16.mxu0 0
  %378 = vmatpush1.bf16.msra.mxu0 %v292
  %379 = vmatprep.subr.bf16.mxu0 0
  %380 = vmatpush1.bf16.msra.mxu0 %v293
  %381 = vmatprep.subr.bf16.mxu0 0
  %382 = vmatpush1.bf16.msra.mxu0 %v294
  %383 = vmatprep.subr.bf16.mxu0 0
  %384 = vmatpush1.bf16.msra.mxu0 %v295
  %385 = vmatprep.subr.bf16.mxu0 0
  %386 = vmatpush1.bf16.msra.mxu0 %v296
  %387 = vmatprep.subr.bf16.mxu0 0
  %388 = vmatpush1.bf16.msra.mxu0 %v297
  %389 = vmatprep.subr.bf16.mxu0 0
  %390 = vmatpush1.bf16.msra.mxu0 %v298
  %391 = vmatprep.mubr.bf16.mxu0 %v132
  %392 = vmatmul.mubr.bf16.gmra.mrb[0].mxu0 %v118
  %v393 = vpop.f32.mrb[0].mxu0
  %v394 = vadd.f32 %v93, %v393
  %v395 = vpop.f32.mrb[0].mxu0
  %v396 = vpop.f32.mrb[0].mxu0
  %v397 = vpop.f32.mrb[0].mxu0
  %398 = vdwg.mxu0
  %399 = vmatprep.subr.bf16.mxu0 0
  %400 = vmatpush1.bf16.msra.mxu0 %v299
  %401 = vmatprep.subr.bf16.mxu0 0
  %402 = vmatpush1.bf16.msra.mxu0 %v300
  %403 = vmatprep.subr.bf16.mxu0 0
  %404 = vmatpush1.bf16.msra.mxu0 %v301
  %405 = vmatprep.subr.bf16.mxu0 0
  %406 = vmatpush1.bf16.msra.mxu0 %v302
  %407 = vmatprep.subr.bf16.mxu0 0
  %408 = vmatpush1.bf16.msra.mxu0 %v303
  %409 = vmatprep.subr.bf16.mxu0 0
  %410 = vmatpush1.bf16.msra.mxu0 %v304
  %411 = vmatprep.subr.bf16.mxu0 0
  %412 = vmatpush1.bf16.msra.mxu0 %v305
  %413 = vmatprep.subr.bf16.mxu0 0
  %414 = vmatpush1.bf16.msra.mxu0 %v306
  %415 = vmatprep.subr.bf16.mxu0 0
  %416 = vmatpush1.bf16.msra.mxu0 %v307
  %417 = vmatprep.subr.bf16.mxu0 0
  %418 = vmatpush1.bf16.msra.mxu0 %v308
  %419 = vmatprep.subr.bf16.mxu0 0
  %420 = vmatpush1.bf16.msra.mxu0 %v309
  %421 = vmatprep.subr.bf16.mxu0 0
  %422 = vmatpush1.bf16.msra.mxu0 %v310
  %423 = vmatprep.subr.bf16.mxu0 0
  %424 = vmatpush1.bf16.msra.mxu0 %v311
  %425 = vmatprep.subr.bf16.mxu0 0
  %426 = vmatpush1.bf16.msra.mxu0 %v312
  %427 = vmatprep.subr.bf16.mxu0 0
  %428 = vmatpush1.bf16.msra.mxu0 %v313
  %429 = vmatprep.subr.bf16.mxu0 0
  %430 = vmatpush1.bf16.msra.mxu0 %v314
  %431 = vmatprep.mubr.bf16.mxu0 %v134
  %432 = vmatmul.mubr.bf16.gmra.mrb[0].mxu0 %v133
  %v433 = vpop.f32.mrb[0].mxu0
  %v434 = vadd.f32 %v394, %v433
  %v435 = vpop.f32.mrb[0].mxu0
  %v436 = vpop.f32.mrb[0].mxu0
  %v437 = vpop.f32.mrb[0].mxu0
  %438 = vdwg.mxu0
  %439 = vmatprep.subr.bf16.mxu0 0
  %440 = vmatpush1.bf16.msra.mxu0 %v315
  %441 = vmatprep.subr.bf16.mxu0 0
  %442 = vmatpush1.bf16.msra.mxu0 %v316
  %443 = vmatprep.subr.bf16.mxu0 0
  %444 = vmatpush1.bf16.msra.mxu0 %v317
  %445 = vmatprep.subr.bf16.mxu0 0
  %446 = vmatpush1.bf16.msra.mxu0 %v318
  %447 = vmatprep.subr.bf16.mxu0 0
  %448 = vmatpush1.bf16.msra.mxu0 0
  %449 = vmatprep.subr.bf16.mxu0 0
  %450 = vmatpush1.bf16.msra.mxu0 0
  %451 = vmatprep.subr.bf16.mxu0 0
  %452 = vmatpush1.bf16.msra.mxu0 0
  %453 = vmatprep.subr.bf16.mxu0 0
  %454 = vmatpush1.bf16.msra.mxu0 0
  %455 = vmatprep.subr.bf16.mxu0 0
  %456 = vmatpush1.bf16.msra.mxu0 0
  %457 = vmatprep.subr.bf16.mxu0 0
  %458 = vmatpush1.bf16.msra.mxu0 0
  %459 = vmatprep.subr.bf16.mxu0 0
  %460 = vmatpush1.bf16.msra.mxu0 0
  %461 = vmatprep.subr.bf16.mxu0 0
  %462 = vmatpush1.bf16.msra.mxu0 0
  %463 = vmatprep.subr.bf16.mxu0 0
  %464 = vmatpush1.bf16.msra.mxu0 0
  %465 = vmatprep.subr.bf16.mxu0 0
  %466 = vmatpush1.bf16.msra.mxu0 0
  %467 = vmatprep.subr.bf16.mxu0 0
  %468 = vmatpush1.bf16.msra.mxu0 0
  %469 = vmatprep.subr.bf16.mxu0 0
  %470 = vmatpush1.bf16.msra.mxu0 0
  %471 = vmatprep.mubr.bf16.mxu0 0
  %472 = vmatmul.mubr.bf16.gmra.mrb[0].mxu0 %v357
  %v473 = vpop.f32.mrb[0].mxu0
  %v474 = vadd.f32 %v434, %v473
  %v475 = vpop.f32.mrb[0].mxu0
  %v476 = vpop.f32.mrb[0].mxu0
  %v477 = vpop.f32.mrb[0].mxu0
  %478 = vdwg.mxu0
  %vm479 = vcmp.gt.f32.partialorder %v474, 0.0
  %v480 = vmul.f32 %v474, 0.01
  %v481 = vsel %vm479, %v474, %v480
  %v482 = vpack.c.bf16 %v481, %v481
  %vm483 = vcmask 516096
  %484 = vst.msk [vmem:[%s3] sm:$0x1] %vm483, %v482
  // Predicated region
  $region14: #{dqn_forward.6} parent=0 // pred_check
    _
  $region15: #{dqn_forward.6} parent=0 // pred_check_branch
    %486 = sbr.rel (0) target = $region17
  $region16: #{dqn_forward.6} parent=0 // pred_region
    _
  $region17: #{dqn_forward.6} parent=0 // pred_fallthru
    _
  // Predicated region
  $region18: #{dqn_forward.6} parent=0 // pred_check
    _
  $region19: #{dqn_forward.6} parent=0 // pred_check_branch
    %488 = sbr.rel (0) target = $region21
  $region20: #{dqn_forward.6} parent=0 // pred_region
    _
  $region21: #{dqn_forward.6} parent=0 // pred_fallthru
    _

// kernel: dqn_forward.7
$region0: #{dqn_forward.7}
  #allocation0 [shape = 'u32[]', space=smem, size = 0x4, offset = 0x4, fixed_abs, tag = 'smem constant byte address 0x4 - core index']
  #allocation1 [shape = 'u32[144,128]{1,0:T(1,128)}', space=vmem, size = 0x12000, scoped, tag = 'internal scratch']
  %s0 = inlined_call_operand.vmem [shape: bf16[2,64], index: 0, kind: input, shape index: {}]
  %s1 = inlined_call_operand.vmem [shape: bf16[64,512], index: 1, kind: input, shape index: {}]
  %s2 = inlined_call_operand.vmem [shape: f32[1,512], index: 2, kind: input, shape index: {}]
  %s3 = inlined_call_operand.vmem [shape: bf16[512,128], index: 3, kind: input, shape index: {}]
  %s4 = inlined_call_operand.vmem [shape: f32[1,128], index: 4, kind: input, shape index: {}]
  %s5 = inlined_call_operand.hbm [shape: f32[2,128], index: 5, kind: output, shape index: {}]
  %s6 = sld [smem:[#allocation0]]
  $region30: #{dqn_forward.7} parent=0
    _
  %s8 = ssub.s32 1, %s6
  %s9 = scalar_select 0, %s8, %s6
  $region1: #{dqn_forward.7} parent=0
    #allocation2 [shape = 'u8[1024]{0}', space=vmem, size = 0x400, scoped, tag = 'output window, operand 0, single buffered']
    #allocation3 [shape = 's32[1]{0}', space=sflag, size = 0x4, scoped, tag = 'scoped memory for dqn_forward.7']
    %10 = vsyncpa [#allocation3], 0
    // Predicated region
    $region2: #{dqn_forward.7} parent=1 // pred_check
      _
    $region3: #{dqn_forward.7} parent=1 // pred_check_branch
      %12 = sbr.rel (0) target = $region5
    $region4: #{dqn_forward.7} parent=1 // pred_region
      _
    $region5: #{dqn_forward.7} parent=1 // pred_fallthru
      _
    // Predicated region
    $region6: #{dqn_forward.7} parent=1 // pred_check
      _
    $region7: #{dqn_forward.7} parent=1 // pred_check_branch
      %14 = sbr.rel (0) target = $region9
    $region8: #{dqn_forward.7} parent=1 // pred_region
      _
    $region9: #{dqn_forward.7} parent=1 // pred_fallthru
      _
    // Predicated region
    $region10: #{dqn_forward.7} parent=1 // pred_check
      _
    $region11: #{dqn_forward.7} parent=1 // pred_check_branch
      %16 = sbr.rel (0) target = $region13
    $region12: #{dqn_forward.7} parent=1 // pred_region
      _
    $region13: #{dqn_forward.7} parent=1 // pred_fallthru
      _
    // Predicated region
    $region14: #{dqn_forward.7} parent=1 // pred_check
      _
    $region15: #{dqn_forward.7} parent=1 // pred_check_branch
      %18 = sbr.rel (0) target = $region17
    $region16: #{dqn_forward.7} parent=1 // pred_region
      _
    $region17: #{dqn_forward.7} parent=1 // pred_fallthru
      _
    // Predicated region
    $region18: #{dqn_forward.7} parent=1 // pred_check
      _
    $region19: #{dqn_forward.7} parent=1 // pred_check_branch
      %20 = sbr.rel (0) target = $region21
    $region20: #{dqn_forward.7} parent=1 // pred_region
      _
    $region21: #{dqn_forward.7} parent=1 // pred_fallthru
      _
    %v22 = vld [vmem:[%s0] sm:$0x1]
    %v23 = vld [vmem:[%s1] sm:$0xff]
    %v24 = vld [vmem:[%s1 + $0x8] sm:$0xff]
    %v25 = vld [vmem:[%s1 + $0x10] sm:$0xff]
    %v26 = vld [vmem:[%s1 + $0x18] sm:$0xff]
    %v27 = vld [vmem:[%s1 + $0x20] sm:$0xff]
    %v28 = vld [vmem:[%s1 + $0x28] sm:$0xff]
    %v29 = vld [vmem:[%s1 + $0x30] sm:$0xff]
    %v30 = vld [vmem:[%s1 + $0x38] sm:$0xff]
    %v31 = vld [vmem:[%s1 + $0x40] sm:$0xff]
    %v32 = vld [vmem:[%s1 + $0x48] sm:$0xff]
    %v33 = vld [vmem:[%s1 + $0x50] sm:$0xff]
    %v34 = vld [vmem:[%s1 + $0x58] sm:$0xff]
    %v35 = vld [vmem:[%s1 + $0x60] sm:$0xff]
    %v36 = vld [vmem:[%s1 + $0x68] sm:$0xff]
    %v37 = vld [vmem:[%s1 + $0x70] sm:$0xff]
    %v38 = vld [vmem:[%s1 + $0x78] sm:$0xff]
    %v39 = vld [vmem:[%s2] sm:$0xf]
    %v41 = vlaneseq
    %v42 = vshrl.u32 %v41, 7
    %v43 = vsub.s32 0, %v42
    %v44 = vrot.slane %v39, %v43
    %v45 = vlaneseq
    %v46 = vshrl.u32 %v45, 7
    %v47 = vsub.s32 1, %v46
    %v48 = vrot.slane %v39, %v47
    %v49 = vlaneseq
    %v50 = vshrl.u32 %v49, 7
    %v51 = vsub.s32 2, %v50
    %v52 = vrot.slane %v39, %v51
    %v53 = vlaneseq
    %v54 = vshrl.u32 %v53, 7
    %v55 = vsub.s32 3, %v54
    %v56 = vrot.slane %v39, %v55
    %v77 = vunpack.c.l.b16 %v23
    %v78 = vunpack.c.h.b16 %v23
    %v79 = vunpack.c.l.b16 %v24
    %v80 = vunpack.c.h.b16 %v24
    %v81 = vunpack.c.l.b16 %v25
    %v82 = vunpack.c.h.b16 %v25
    %v83 = vunpack.c.l.b16 %v26
    %v84 = vunpack.c.h.b16 %v26
    %v85 = vunpack.c.l.b16 %v27
    %v86 = vunpack.c.h.b16 %v27
    %v87 = vunpack.c.l.b16 %v28
    %v88 = vunpack.c.h.b16 %v28
    %v89 = vunpack.c.l.b16 %v29
    %v90 = vunpack.c.h.b16 %v29
    %v91 = vunpack.c.l.b16 %v30
    %v92 = vunpack.c.h.b16 %v30
    %v93 = vunpack.c.l.b16 %v31
    %v94 = vunpack.c.h.b16 %v31
    %v95 = vunpack.c.l.b16 %v32
    %v96 = vunpack.c.h.b16 %v32
    %v97 = vunpack.c.l.b16 %v33
    %v98 = vunpack.c.h.b16 %v33
    %v99 = vunpack.c.l.b16 %v34
    %v100 = vunpack.c.h.b16 %v34
    %v101 = vunpack.c.l.b16 %v35
    %v102 = vunpack.c.h.b16 %v35
    %v103 = vunpack.c.l.b16 %v36
    %v104 = vunpack.c.h.b16 %v36
    %v105 = vunpack.c.l.b16 %v37
    %v106 = vunpack.c.h.b16 %v37
    %v107 = vunpack.c.l.b16 %v38
    %v108 = vunpack.c.h.b16 %v38
    %v109 = vpack.c.b16 %v81, %v77
    %v110 = vpack.c.b16 %v82, %v78
    %v111 = vpack.c.b16 %v83, %v79
    %v112 = vpack.c.b16 %v84, %v80
    %v113 = vpack.c.b16 %v89, %v85
    %v114 = vpack.c.b16 %v90, %v86
    %v115 = vpack.c.b16 %v91, %v87
    %v116 = vpack.c.b16 %v92, %v88
    %v117 = vpack.c.b16 %v97, %v93
    %v118 = vpack.c.b16 %v98, %v94
    %v119 = vpack.c.b16 %v99, %v95
    %v120 = vpack.c.b16 %v100, %v96
    %v121 = vpack.c.b16 %v105, %v101
    %v122 = vpack.c.b16 %v106, %v102
    %v123 = vpack.c.b16 %v107, %v103
    %v124 = vpack.c.b16 %v108, %v104
    %vm141 = vcmask 523264
    %v143 = vsel %vm141, %v22, 0
    %145 = vmatprep.subr.bf16.mxu0 %v110
    %146 = vmatpush1.bf16.msra.mxu0 %v109
    %147 = vmatprep.subr.bf16.mxu0 %v114
    %148 = vmatpush1.bf16.msra.mxu0 %v113
    %149 = vmatprep.subr.bf16.mxu0 %v118
    %150 = vmatpush1.bf16.msra.mxu0 %v117
    %151 = vmatprep.subr.bf16.mxu0 %v122
    %152 = vmatpush1.bf16.msra.mxu0 %v121
    %153 = vmatprep.subr.bf16.mxu0 0
    %154 = vmatpush1.bf16.msra.mxu0 0
    %155 = vmatprep.subr.bf16.mxu0 0
    %156 = vmatpush1.bf16.msra.mxu0 0
    %157 = vmatprep.subr.bf16.mxu0 0
    %158 = vmatpush1.bf16.msra.mxu0 0
    %159 = vmatprep.subr.bf16.mxu0 0
    %160 = vmatpush1.bf16.msra.mxu0 0
    %161 = vmatprep.subr.bf16.mxu0 0
    %162 = vmatpush1.bf16.msra.mxu0 0
    %163 = vmatprep.subr.bf16.mxu0 0
    %164 = vmatpush1.bf16.msra.mxu0 0
    %165 = vmatprep.subr.bf16.mxu0 0
    %166 = vmatpush1.bf16.msra.mxu0 0
    %167 = vmatprep.subr.bf16.mxu0 0
    %168 = vmatpush1.bf16.msra.mxu0 0
    %169 = vmatprep.subr.bf16.mxu0 0
    %170 = vmatpush1.bf16.msra.mxu0 0
    %171 = vmatprep.subr.bf16.mxu0 0
    %172 = vmatpush1.bf16.msra.mxu0 0
    %173 = vmatprep.subr.bf16.mxu0 0
    %174 = vmatpush1.bf16.msra.mxu0 0
    %175 = vmatprep.subr.bf16.mxu0 0
    %176 = vmatpush1.bf16.msra.mxu0 0
    %177 = vmatprep.mubr.bf16.mxu0 0
    %178 = vmatmul.mubr.bf16.gmra.mrb[0].mxu0 %v143
    %v179 = vpop.f32.mrb[0].mxu0
    %v180 = vadd.f32 %v44, %v179
    %v181 = vpop.f32.mrb[0].mxu0
    %v182 = vadd.f32 %v48, %v181
    %v183 = vpop.f32.mrb[0].mxu0
    %v184 = vpop.f32.mrb[0].mxu0
    %185 = vdwg.mxu0
    %186 = vmatprep.subr.bf16.mxu0 %v112
    %187 = vmatpush1.bf16.msra.mxu0 %v111
    %188 = vmatprep.subr.bf16.mxu0 %v116
    %189 = vmatpush1.bf16.msra.mxu0 %v115
    %190 = vmatprep.subr.bf16.mxu0 %v120
    %191 = vmatpush1.bf16.msra.mxu0 %v119
    %192 = vmatprep.subr.bf16.mxu0 %v124
    %193 = vmatpush1.bf16.msra.mxu0 %v123
    %194 = vmatprep.subr.bf16.mxu0 0
    %195 = vmatpush1.bf16.msra.mxu0 0
    %196 = vmatprep.subr.bf16.mxu0 0
    %197 = vmatpush1.bf16.msra.mxu0 0
    %198 = vmatprep.subr.bf16.mxu0 0
    %199 = vmatpush1.bf16.msra.mxu0 0
    %200 = vmatprep.subr.bf16.mxu0 0
    %201 = vmatpush1.bf16.msra.mxu0 0
    %202 = vmatprep.subr.bf16.mxu0 0
    %203 = vmatpush1.bf16.msra.mxu0 0
    %204 = vmatprep.subr.bf16.mxu0 0
    %205 = vmatpush1.bf16.msra.mxu0 0
    %206 = vmatprep.subr.bf16.mxu0 0
    %207 = vmatpush1.bf16.msra.mxu0 0
    %208 = vmatprep.subr.bf16.mxu0 0
    %209 = vmatpush1.bf16.msra.mxu0 0
    %210 = vmatprep.subr.bf16.mxu0 0
    %211 = vmatpush1.bf16.msra.mxu0 0
    %212 = vmatprep.subr.bf16.mxu0 0
    %213 = vmatpush1.bf16.msra.mxu0 0
    %214 = vmatprep.subr.bf16.mxu0 0
    %215 = vmatpush1.bf16.msra.mxu0 0
    %216 = vmatprep.subr.bf16.mxu0 0
    %217 = vmatpush1.bf16.msra.mxu0 0
    %218 = vmatprep.mubr.bf16.mxu0 0
    %219 = vmatmul.mubr.bf16.gmra.mrb[0].mxu0 %v143
    %v220 = vpop.f32.mrb[0].mxu0
    %v221 = vadd.f32 %v52, %v220
    %v222 = vpop.f32.mrb[0].mxu0
    %v223 = vadd.f32 %v56, %v222
    %v224 = vpop.f32.mrb[0].mxu0
    %v225 = vpop.f32.mrb[0].mxu0
    %226 = vdwg.mxu0
    %vm227 = vcmp.gt.f32.partialorder %v180, 0.0
    %vm228 = vcmp.gt.f32.partialorder %v182, 0.0
    %vm229 = vcmp.gt.f32.partialorder %v221, 0.0
    %vm230 = vcmp.gt.f32.partialorder %v223, 0.0
    %v231 = vmul.f32 %v180, 0.01
    %v232 = vmul.f32 %v182, 0.01
    %v233 = vmul.f32 %v221, 0.01
    %v234 = vmul.f32 %v223, 0.01
    %v235 = vsel %vm227, %v180, %v231
    %v236 = vsel %vm228, %v182, %v232
    %v237 = vsel %vm229, %v221, %v233
    %v238 = vsel %vm230, %v223, %v234
    %v239 = vpack.c.bf16 %v235, %v235
    %v240 = vpack.c.bf16 %v236, %v236
    %v241 = vpack.c.bf16 %v237, %v237
    %v242 = vpack.c.bf16 %v238, %v238
    %v243 = vld [vmem:[%s3] sm:$0xf]
    %v244 = vld [vmem:[%s3 + $0x4] sm:$0xf]
    %v245 = vld [vmem:[%s3 + $0x8] sm:$0xf]
    %v246 = vld [vmem:[%s3 + $0xc] sm:$0xf]
    %v247 = vld [vmem:[%s3 + $0x10] sm:$0xf]
    %v248 = vld [vmem:[%s3 + $0x14] sm:$0xf]
    %v249 = vld [vmem:[%s3 + $0x18] sm:$0xf]
    %v250 = vld [vmem:[%s3 + $0x1c] sm:$0xf]
    %v251 = vld [vmem:[%s3 + $0x20] sm:$0xf]
    %v252 = vld [vmem:[%s3 + $0x24] sm:$0xf]
    %v253 = vld [vmem:[%s3 + $0x28] sm:$0xf]
    %v254 = vld [vmem:[%s3 + $0x2c] sm:$0xf]
    %v255 = vld [vmem:[%s3 + $0x30] sm:$0xf]
    %v256 = vld [vmem:[%s3 + $0x34] sm:$0xf]
    %v257 = vld [vmem:[%s3 + $0x38] sm:$0xf]
    %v258 = vld [vmem:[%s3 + $0x3c] sm:$0xf]
    %v259 = vld [vmem:[%s3 + $0x40] sm:$0xf]
    %v260 = vld [vmem:[%s3 + $0x44] sm:$0xf]
    %v261 = vld [vmem:[%s3 + $0x48] sm:$0xf]
    %v262 = vld [vmem:[%s3 + $0x4c] sm:$0xf]
    %v263 = vld [vmem:[%s3 + $0x50] sm:$0xf]
    %v264 = vld [vmem:[%s3 + $0x54] sm:$0xf]
    %v265 = vld [vmem:[%s3 + $0x58] sm:$0xf]
    %v266 = vld [vmem:[%s3 + $0x5c] sm:$0xf]
    %v267 = vld [vmem:[%s3 + $0x60] sm:$0xf]
    %v268 = vld [vmem:[%s3 + $0x64] sm:$0xf]
    %v269 = vld [vmem:[%s3 + $0x68] sm:$0xf]
    %v270 = vld [vmem:[%s3 + $0x6c] sm:$0xf]
    %v271 = vld [vmem:[%s3 + $0x70] sm:$0xf]
    %v272 = vld [vmem:[%s3 + $0x74] sm:$0xf]
    %v273 = vld [vmem:[%s3 + $0x78] sm:$0xf]
    %v274 = vld [vmem:[%s3 + $0x7c] sm:$0xf]
    %v275 = vld [vmem:[%s3 + $0x80] sm:$0xf]
    %v276 = vld [vmem:[%s3 + $0x84] sm:$0xf]
    %v277 = vld [vmem:[%s3 + $0x88] sm:$0xf]
    %v278 = vld [vmem:[%s3 + $0x8c] sm:$0xf]
    %v279 = vld [vmem:[%s3 + $0x90] sm:$0xf]
    %v280 = vld [vmem:[%s3 + $0x94] sm:$0xf]
    %v281 = vld [vmem:[%s3 + $0x98] sm:$0xf]
    %v282 = vld [vmem:[%s3 + $0x9c] sm:$0xf]
    %v283 = vld [vmem:[%s3 + $0xa0] sm:$0xf]
    %v284 = vld [vmem:[%s3 + $0xa4] sm:$0xf]
    %v285 = vld [vmem:[%s3 + $0xa8] sm:$0xf]
    %v286 = vld [vmem:[%s3 + $0xac] sm:$0xf]
    %v287 = vld [vmem:[%s3 + $0xb0] sm:$0xf]
    %v288 = vld [vmem:[%s3 + $0xb4] sm:$0xf]
    %v289 = vld [vmem:[%s3 + $0xb8] sm:$0xf]
    %v290 = vld [vmem:[%s3 + $0xbc] sm:$0xf]
    %v291 = vld [vmem:[%s3 + $0xc0] sm:$0xf]
    %v292 = vld [vmem:[%s3 + $0xc4] sm:$0xf]
    %v293 = vld [vmem:[%s3 + $0xc8] sm:$0xf]
    %v294 = vld [vmem:[%s3 + $0xcc] sm:$0xf]
    %v295 = vld [vmem:[%s3 + $0xd0] sm:$0xf]
    %v296 = vld [vmem:[%s3 + $0xd4] sm:$0xf]
    %v297 = vld [vmem:[%s3 + $0xd8] sm:$0xf]
    %v298 = vld [vmem:[%s3 + $0xdc] sm:$0xf]
    %v299 = vld [vmem:[%s3 + $0xe0] sm:$0xf]
    %v300 = vld [vmem:[%s3 + $0xe4] sm:$0xf]
    %v301 = vld [vmem:[%s3 + $0xe8] sm:$0xf]
    %v302 = vld [vmem:[%s3 + $0xec] sm:$0xf]
    %v303 = vld [vmem:[%s3 + $0xf0] sm:$0xf]
    %v304 = vld [vmem:[%s3 + $0xf4] sm:$0xf]
    %v305 = vld [vmem:[%s3 + $0xf8] sm:$0xf]
    %v306 = vld [vmem:[%s3 + $0xfc] sm:$0xf]
    %v307 = vld [vmem:[%s4] sm:$0x1]
    %v309 = vlaneseq
    %v310 = vshrl.u32 %v309, 7
    %v311 = vsub.s32 0, %v310
    %v312 = vrot.slane %v307, %v311
    %v378 = vunpack.c.l.b16 %v243
    %v379 = vunpack.c.l.b16 %v244
    %v380 = vunpack.c.l.b16 %v245
    %v381 = vunpack.c.l.b16 %v246
    %v382 = vunpack.c.l.b16 %v247
    %v383 = vunpack.c.l.b16 %v248
    %v384 = vunpack.c.l.b16 %v249
    %v385 = vunpack.c.l.b16 %v250
    %v386 = vunpack.c.l.b16 %v251
    %v387 = vunpack.c.l.b16 %v252
    %v388 = vunpack.c.l.b16 %v253
    %v389 = vunpack.c.l.b16 %v254
    %v390 = vunpack.c.l.b16 %v255
    %v391 = vunpack.c.l.b16 %v256
    %v392 = vunpack.c.l.b16 %v257
    %v393 = vunpack.c.l.b16 %v258
    %v394 = vunpack.c.l.b16 %v259
    %v395 = vunpack.c.l.b16 %v260
    %v396 = vunpack.c.l.b16 %v261
    %v397 = vunpack.c.l.b16 %v262
    %v398 = vunpack.c.l.b16 %v263
    %v399 = vunpack.c.l.b16 %v264
    %v400 = vunpack.c.l.b16 %v265
    %v401 = vunpack.c.l.b16 %v266
    %v402 = vunpack.c.l.b16 %v267
    %v403 = vunpack.c.l.b16 %v268
    %v404 = vunpack.c.l.b16 %v269
    %v405 = vunpack.c.l.b16 %v270
    %v406 = vunpack.c.l.b16 %v271
    %v407 = vunpack.c.l.b16 %v272
    %v408 = vunpack.c.l.b16 %v273
    %v409 = vunpack.c.l.b16 %v274
    %v410 = vunpack.c.l.b16 %v275
    %v411 = vunpack.c.l.b16 %v276
    %v412 = vunpack.c.l.b16 %v277
    %v413 = vunpack.c.l.b16 %v278
    %v414 = vunpack.c.l.b16 %v279
    %v415 = vunpack.c.l.b16 %v280
    %v416 = vunpack.c.l.b16 %v281
    %v417 = vunpack.c.l.b16 %v282
    %v418 = vunpack.c.l.b16 %v283
    %v419 = vunpack.c.l.b16 %v284
    %v420 = vunpack.c.l.b16 %v285
    %v421 = vunpack.c.l.b16 %v286
    %v422 = vunpack.c.l.b16 %v287
    %v423 = vunpack.c.l.b16 %v288
    %v424 = vunpack.c.l.b16 %v289
    %v425 = vunpack.c.l.b16 %v290
    %v426 = vunpack.c.l.b16 %v291
    %v427 = vunpack.c.l.b16 %v292
    %v428 = vunpack.c.l.b16 %v293
    %v429 = vunpack.c.l.b16 %v294
    %v430 = vunpack.c.l.b16 %v295
    %v431 = vunpack.c.l.b16 %v296
    %v432 = vunpack.c.l.b16 %v297
    %v433 = vunpack.c.l.b16 %v298
    %v434 = vunpack.c.l.b16 %v299
    %v435 = vunpack.c.l.b16 %v300
    %v436 = vunpack.c.l.b16 %v301
    %v437 = vunpack.c.l.b16 %v302
    %v438 = vunpack.c.l.b16 %v303
    %v439 = vunpack.c.l.b16 %v304
    %v440 = vunpack.c.l.b16 %v305
    %v441 = vunpack.c.l.b16 %v306
    %v442 = vpack.c.b16 %v379, %v378
    %v443 = vpack.c.b16 %v381, %v380
    %v444 = vpack.c.b16 %v383, %v382
    %v445 = vpack.c.b16 %v385, %v384
    %v446 = vpack.c.b16 %v387, %v386
    %v447 = vpack.c.b16 %v389, %v388
    %v448 = vpack.c.b16 %v391, %v390
    %v449 = vpack.c.b16 %v393, %v392
    %v450 = vpack.c.b16 %v395, %v394
    %v451 = vpack.c.b16 %v397, %v396
    %v452 = vpack.c.b16 %v399, %v398
    %v453 = vpack.c.b16 %v401, %v400
    %v454 = vpack.c.b16 %v403, %v402
    %v455 = vpack.c.b16 %v405, %v404
    %v456 = vpack.c.b16 %v407, %v406
    %v457 = vpack.c.b16 %v409, %v408
    %v458 = vpack.c.b16 %v411, %v410
    %v459 = vpack.c.b16 %v413, %v412
    %v460 = vpack.c.b16 %v415, %v414
    %v461 = vpack.c.b16 %v417, %v416
    %v462 = vpack.c.b16 %v419, %v418
    %v463 = vpack.c.b16 %v421, %v420
    %v464 = vpack.c.b16 %v423, %v422
    %v465 = vpack.c.b16 %v425, %v424
    %v466 = vpack.c.b16 %v427, %v426
    %v467 = vpack.c.b16 %v429, %v428
    %v468 = vpack.c.b16 %v431, %v430
    %v469 = vpack.c.b16 %v433, %v432
    %v470 = vpack.c.b16 %v435, %v434
    %v471 = vpack.c.b16 %v437, %v436
    %v472 = vpack.c.b16 %v439, %v438
    %v473 = vpack.c.b16 %v441, %v440
    %506 = vmatprep.subr.bf16.mxu0 0
    %507 = vmatpush1.bf16.msra.mxu0 %v442
    %508 = vmatprep.subr.bf16.mxu0 0
    %509 = vmatpush1.bf16.msra.mxu0 %v443
    %510 = vmatprep.subr.bf16.mxu0 0
    %511 = vmatpush1.bf16.msra.mxu0 %v444
    %512 = vmatprep.subr.bf16.mxu0 0
    %513 = vmatpush1.bf16.msra.mxu0 %v445
    %514 = vmatprep.subr.bf16.mxu0 0
    %515 = vmatpush1.bf16.msra.mxu0 %v446
    %516 = vmatprep.subr.bf16.mxu0 0
    %517 = vmatpush1.bf16.msra.mxu0 %v447
    %518 = vmatprep.subr.bf16.mxu0 0
    %519 = vmatpush1.bf16.msra.mxu0 %v448
    %520 = vmatprep.subr.bf16.mxu0 0
    %521 = vmatpush1.bf16.msra.mxu0 %v449
    %522 = vmatprep.subr.bf16.mxu0 0
    %523 = vmatpush1.bf16.msra.mxu0 %v450
    %524 = vmatprep.subr.bf16.mxu0 0
    %525 = vmatpush1.bf16.msra.mxu0 %v451
    %526 = vmatprep.subr.bf16.mxu0 0
    %527 = vmatpush1.bf16.msra.mxu0 %v452
    %528 = vmatprep.subr.bf16.mxu0 0
    %529 = vmatpush1.bf16.msra.mxu0 %v453
    %530 = vmatprep.subr.bf16.mxu0 0
    %531 = vmatpush1.bf16.msra.mxu0 %v454
    %532 = vmatprep.subr.bf16.mxu0 0
    %533 = vmatpush1.bf16.msra.mxu0 %v455
    %534 = vmatprep.subr.bf16.mxu0 0
    %535 = vmatpush1.bf16.msra.mxu0 %v456
    %536 = vmatprep.subr.bf16.mxu0 0
    %537 = vmatpush1.bf16.msra.mxu0 %v457
    %538 = vmatprep.mubr.bf16.mxu0 %v240
    %539 = vmatmul.mubr.bf16.gmra.mrb[0].mxu0 %v239
    %v540 = vpop.f32.mrb[0].mxu0
    %v541 = vadd.f32 %v312, %v540
    %v542 = vpop.f32.mrb[0].mxu0
    %v543 = vpop.f32.mrb[0].mxu0
    %v544 = vpop.f32.mrb[0].mxu0
    %545 = vdwg.mxu0
    %546 = vmatprep.subr.bf16.mxu0 0
    %547 = vmatpush1.bf16.msra.mxu0 %v458
    %548 = vmatprep.subr.bf16.mxu0 0
    %549 = vmatpush1.bf16.msra.mxu0 %v459
    %550 = vmatprep.subr.bf16.mxu0 0
    %551 = vmatpush1.bf16.msra.mxu0 %v460
    %552 = vmatprep.subr.bf16.mxu0 0
    %553 = vmatpush1.bf16.msra.mxu0 %v461
    %554 = vmatprep.subr.bf16.mxu0 0
    %555 = vmatpush1.bf16.msra.mxu0 %v462
    %556 = vmatprep.subr.bf16.mxu0 0
    %557 = vmatpush1.bf16.msra.mxu0 %v463
    %558 = vmatprep.subr.bf16.mxu0 0
    %559 = vmatpush1.bf16.msra.mxu0 %v464
    %560 = vmatprep.subr.bf16.mxu0 0
    %561 = vmatpush1.bf16.msra.mxu0 %v465
    %562 = vmatprep.subr.bf16.mxu0 0
    %563 = vmatpush1.bf16.msra.mxu0 %v466
    %564 = vmatprep.subr.bf16.mxu0 0
    %565 = vmatpush1.bf16.msra.mxu0 %v467
    %566 = vmatprep.subr.bf16.mxu0 0
    %567 = vmatpush1.bf16.msra.mxu0 %v468
    %568 = vmatprep.subr.bf16.mxu0 0
    %569 = vmatpush1.bf16.msra.mxu0 %v469
    %570 = vmatprep.subr.bf16.mxu0 0
    %571 = vmatpush1.bf16.msra.mxu0 %v470
    %572 = vmatprep.subr.bf16.mxu0 0
    %573 = vmatpush1.bf16.msra.mxu0 %v471
    %574 = vmatprep.subr.bf16.mxu0 0
    %575 = vmatpush1.bf16.msra.mxu0 %v472
    %576 = vmatprep.subr.bf16.mxu0 0
    %577 = vmatpush1.bf16.msra.mxu0 %v473
    %578 = vmatprep.mubr.bf16.mxu0 %v242
    %579 = vmatmul.mubr.bf16.gmra.mrb[0].mxu0 %v241
    %v580 = vpop.f32.mrb[0].mxu0
    %v581 = vadd.f32 %v541, %v580
    %v582 = vpop.f32.mrb[0].mxu0
    %v583 = vpop.f32.mrb[0].mxu0
    %v584 = vpop.f32.mrb[0].mxu0
    %585 = vdwg.mxu0
    %586 = vst [vmem:[#allocation2] sm:$0x3] %v581
    // Predicated region
    $region22: #{dqn_forward.7} parent=1 // pred_check
      _
    $region23: #{dqn_forward.7} parent=1 // pred_check_branch
      %588 = sbr.rel (0) target = $region25
    $region24: #{dqn_forward.7} parent=1 // pred_region
      %s590 = ssub.s32 32, 32
      %591 = vsyncadd [#allocation3], %s590
      %s593 = sshll.u32 [#allocation2], 4
      %s594 = int_to_ptr.vmem [resolvable:$true] %s593
      %596 = dma.vmem_to_hbm [thread:$0]  %s594, 32, %s5, [#allocation3]
    $region25: #{dqn_forward.7} parent=1 // pred_fallthru
      _
    // Predicated region
    $region26: #{dqn_forward.7} parent=1 // pred_check
      _
    $region27: #{dqn_forward.7} parent=1 // pred_check_branch
      %598 = sbr.rel (0) target = $region29
    $region28: #{dqn_forward.7} parent=1 // pred_region
      %599 = dma.done [#allocation3], 32
    $region29: #{dqn_forward.7} parent=1 // pred_fallthru
      _
    %600 = vsyncpa [#allocation3], 1

</llo_original>
